<compile_context>
chip_gen: v7x
topology: tpu7x:2x2x1
jax: 0.10.0
libtpu: 0.0.40
codegen_flags: <defaults>
</compile_context>

<pallas_src>
import functools

import jax
import jax.numpy as jnp
from jax.experimental import pallas as pl
from jax.experimental.pallas import tpu as pltpu

N_EMBD = 192
N_HEAD = 6
HEAD_SIZE = N_EMBD // N_HEAD      # 32
LN_EPS = 1e-5
ATTN_SCALE = HEAD_SIZE ** (-0.5)
NEG_BIG = -1e30                   # finite "-inf" for the causal mask


def _layer_norm(v, g, b):
    mu = jnp.mean(v, axis=-1, keepdims=True)
    var = jnp.mean((v - mu) ** 2, axis=-1, keepdims=True)
    return (v - mu) * jax.lax.rsqrt(var + LN_EPS) * g + b


# ---------------------------------------------------------------------------
# Stage 1: ln1 + Q/K/V projection -> head-major bf16 caches (once per batch).
# ---------------------------------------------------------------------------
def qkv_kernel(x_ref, ln1g_ref, ln1b_ref, wq_ref, wk_ref, wv_ref,
               q_ref, k_ref, v_ref):
    xf = x_ref[0].astype(jnp.float32)                                # (T, C)
    xn = _layer_norm(xf, ln1g_ref[0], ln1b_ref[0]).astype(jnp.bfloat16)
    q = (jnp.dot(xn, wq_ref[...], preferred_element_type=jnp.float32)
         * ATTN_SCALE).astype(jnp.bfloat16)                          # (T, C)
    k = jnp.dot(xn, wk_ref[...],
                preferred_element_type=jnp.float32).astype(jnp.bfloat16)
    v = jnp.dot(xn, wv_ref[...],
                preferred_element_type=jnp.float32).astype(jnp.bfloat16)
    # Head split done once per batch element (off the attention hot path).
    for h in range(N_HEAD):
        sl = slice(h * HEAD_SIZE, (h + 1) * HEAD_SIZE)
        q_ref[0, h] = q[:, sl]
        k_ref[0, h] = k[:, sl]
        v_ref[0, h] = v[:, sl]


# ---------------------------------------------------------------------------
# Stage 2: causal attention (KV-trimmed, online softmax) + proj + MLP.
# ---------------------------------------------------------------------------
def attn_ffn_kernel(x_ref, q_ref, k_ref, v_ref, wp_ref, bp_ref,
                    ln2g_ref, ln2b_ref, w1_ref, b1_ref, w2_ref, b2_ref,
                    o_ref, m_scr, l_scr, acc_scr, *, q_tile):
    qi = pl.program_id(1)
    q0 = qi * q_tile

    # Scratch persists across grid steps -> re-initialize per query tile.
    m_scr[...] = jnp.full_like(m_scr, NEG_BIG)
    l_scr[...] = jnp.zeros_like(l_scr)
    acc_scr[...] = jnp.zeros_like(acc_scr)

    q = q_ref[0]                                       # (H, TQ, D) bf16, pre-scaled
    rows = q0 + jax.lax.broadcasted_iota(jnp.int32, (q_tile, q_tile), 0)

    # Causal KV trim: only the first (qi + 1) key tiles can be unmasked.
    def kv_step(j, carry):
        kv0 = pl.multiple_of(j * q_tile, q_tile)
        kt = k_ref[0, :, pl.ds(kv0, q_tile), :]        # (H, KV, D) bf16
        vt = v_ref[0, :, pl.ds(kv0, q_tile), :]        # (H, KV, D) bf16
        s = jnp.einsum("hqd,hkd->hqk", q, kt,
                       preferred_element_type=jnp.float32)   # (H, TQ, KV) f32
        cols = kv0 + jax.lax.broadcasted_iota(jnp.int32, (q_tile, q_tile), 1)
        s = jnp.where((cols <= rows)[None], s, NEG_BIG)

        m_prev = m_scr[...]
        m_new = jnp.maximum(m_prev, jnp.max(s, axis=-1, keepdims=True))
        alpha = jnp.exp(m_prev - m_new)
        p = jnp.exp(s - m_new)
        l_scr[...] = alpha * l_scr[...] + jnp.sum(p, axis=-1, keepdims=True)
        acc_scr[...] = alpha * acc_scr[...] + jnp.einsum(
            "hqk,hkd->hqd", p.astype(jnp.bfloat16), vt,
            preferred_element_type=jnp.float32)
        m_scr[...] = m_new
        return carry

    jax.lax.fori_loop(0, qi + 1, kv_step, 0)

    inv_l = pl.reciprocal(l_scr[...], approx=True)             # (H, TQ, 1)
    o = (acc_scr[...] * inv_l).astype(jnp.bfloat16)            # (H, TQ, D)

    # Fused output projection: lane-dense (TQ, 192) slab, one 192-deep matmul.
    o_flat = jnp.concatenate([o[h] for h in range(N_HEAD)], axis=-1)
    sa = jnp.dot(o_flat, wp_ref[...],
                 preferred_element_type=jnp.float32) + bp_ref[0]   # (TQ, C)

    x1 = x_ref[0].astype(jnp.float32) + sa        # attn/proj dropout = identity

    xn2 = _layer_norm(x1, ln2g_ref[0], ln2b_ref[0])
    h1 = jnp.dot(xn2.astype(jnp.bfloat16), w1_ref[...],
                 preferred_element_type=jnp.float32) + b1_ref[0]
    h1 = jnp.maximum(h1, 0.0)
    ff = jnp.dot(h1.astype(jnp.bfloat16), w2_ref[...],
                 preferred_element_type=jnp.float32) + b2_ref[0]

    o_ref[0] = (x1 + ff).astype(o_ref.dtype)      # ffwd dropout = identity


def transformer_block(x, params, *, q_tile=None):
    """x: (B, T, C) float32; returns (B, T, C) float32."""
    B, T, C = x.shape
    assert C == N_EMBD

    if q_tile is None:
        # 128 is a good portable default (v5e/v7x); v6e can use 256 for long
        # sequences if desired (more VMEM headroom).
        q_tile = min(128, ((T + 15) // 16) * 16)
    assert q_tile % 16 == 0, "q_tile must be a multiple of 16 (bf16 sublanes)"

    # Zero-pad the sequence to a multiple of q_tile.  Zero padding keeps
    # LayerNorm finite on padded rows; real rows never attend padded keys
    # (causal mask on absolute indices < T); padded query rows are sliced off.
    T_pad = ((T + q_tile - 1) // q_tile) * q_tile
    if T_pad != T:
        x = jnp.pad(x, ((0, 0), (0, T_pad - T), (0, 0)))
    nq = T_pad // q_tile

    f32, bf16 = jnp.float32, jnp.bfloat16
    ln1g = params["ln1g"].reshape(1, -1).astype(f32)
    ln1b = params["ln1b"].reshape(1, -1).astype(f32)
    wq = params["wq"].astype(bf16)
    wk = params["wk"].astype(bf16)
    wv = params["wv"].astype(bf16)
    wp = params["wp"].astype(bf16)
    bp = params["bp"].reshape(1, -1).astype(f32)
    ln2g = params["ln2g"].reshape(1, -1).astype(f32)
    ln2b = params["ln2b"].reshape(1, -1).astype(f32)
    w1 = params["w1"].astype(bf16)
    b1 = params["b1"].reshape(1, -1).astype(f32)
    w2 = params["w2"].astype(bf16)
    b2 = params["b2"].reshape(1, -1).astype(f32)

    # ---- Stage 1: head-major bf16 Q/K/V caches -----------------------------
    def const2(shape):
        return pl.BlockSpec(shape, lambda b: (0, 0))

    hm_shape = (B, N_HEAD, T_pad, HEAD_SIZE)
    hm_spec = pl.BlockSpec((1, N_HEAD, T_pad, HEAD_SIZE),
                           lambda b: (b, 0, 0, 0))
    q_hm, k_hm, v_hm = pl.pallas_call(
        qkv_kernel,
        out_shape=(jax.ShapeDtypeStruct(hm_shape, bf16),) * 3,
        grid=(B,),
        in_specs=[pl.BlockSpec((1, T_pad, C), lambda b: (b, 0, 0)),
                  const2((1, C)), const2((1, C)),
                  const2((C, C)), const2((C, C)), const2((C, C))],
        out_specs=(hm_spec, hm_spec, hm_spec),
        compiler_params=pltpu.CompilerParams(
            dimension_semantics=("parallel",),
            vmem_limit_bytes=32 * 1024 * 1024),
    )(x, ln1g, ln1b, wq, wk, wv)

    # ---- Stage 2: attention + projection + MLP, fully parallel grid --------
    def const3(shape):
        return pl.BlockSpec(shape, lambda b, qi: (0, 0))

    out = pl.pallas_call(
        functools.partial(attn_ffn_kernel, q_tile=q_tile),
        out_shape=jax.ShapeDtypeStruct((B, T_pad, C), x.dtype),
        grid=(B, nq),
        in_specs=[
            pl.BlockSpec((1, q_tile, C), lambda b, qi: (b, qi, 0)),          # x tile
            pl.BlockSpec((1, N_HEAD, q_tile, HEAD_SIZE),
                         lambda b, qi: (b, 0, qi, 0)),                       # q tile
            pl.BlockSpec((1, N_HEAD, T_pad, HEAD_SIZE),
                         lambda b, qi: (b, 0, 0, 0)),                        # k (full)
            pl.BlockSpec((1, N_HEAD, T_pad, HEAD_SIZE),
                         lambda b, qi: (b, 0, 0, 0)),                        # v (full)
            const3((C, C)), const3((1, C)),                                  # wp, bp
            const3((1, C)), const3((1, C)),                                  # ln2 g,b
            const3((C, 4 * C)), const3((1, 4 * C)),                          # w1, b1
            const3((4 * C, C)), const3((1, C)),                              # w2, b2
        ],
        out_specs=pl.BlockSpec((1, q_tile, C), lambda b, qi: (b, qi, 0)),
        scratch_shapes=[
            pltpu.VMEM((N_HEAD, q_tile, 1), jnp.float32),          # running max
            pltpu.VMEM((N_HEAD, q_tile, 1), jnp.float32),          # running denom
            pltpu.VMEM((N_HEAD, q_tile, HEAD_SIZE), jnp.float32),  # output acc
        ],
        compiler_params=pltpu.CompilerParams(
            dimension_semantics=("parallel", "parallel"),
            vmem_limit_bytes=32 * 1024 * 1024),
    )(x, q_hm, k_hm, v_hm, wp, bp, ln2g, ln2b, w1, b1, w2, b2)

    return out[:, :T, :] if T_pad != T else out


# ---------------------------------------------------------------------------
# Pure-JAX f32 reference (mirrors the PyTorch module in eval mode).
# ---------------------------------------------------------------------------
def reference_block(x, p):
    B, T, C = x.shape

    def ln(v, g, b):
        mu = v.mean(-1, keepdims=True)
        var = ((v - mu) ** 2).mean(-1, keepdims=True)
        return (v - mu) / jnp.sqrt(var + LN_EPS) * g + b

    xn = ln(x, p["ln1g"], p["ln1b"])
    q = (xn @ p["wq"]).reshape(B, T, N_HEAD, HEAD_SIZE)
    k = (xn @ p["wk"]).reshape(B, T, N_HEAD, HEAD_SIZE)
    v = (xn @ p["wv"]).reshape(B, T, N_HEAD, HEAD_SIZE)
    wei = jnp.einsum("bthd,bshd->bhts", q, k) * HEAD_SIZE ** (-0.5)
    mask = jnp.tril(jnp.ones((T, T), bool))
    wei = jnp.where(mask, wei, -jnp.inf)
    wei = jax.nn.softmax(wei, axis=-1)
    out = jnp.einsum("bhts,bshd->bthd", wei, v).reshape(B, T, C)
    x = x + out @ p["wp"] + p["bp"]
    xn2 = ln(x, p["ln2g"], p["ln2b"])
    x = x + jnp.maximum(xn2 @ p["w1"] + p["b1"], 0.0) @ p["w2"] + p["b2"]
    return x


def init_params(key):
    ks = jax.random.split(key, 8)
    C, H = N_EMBD, 4 * N_EMBD
    s = 0.02
    return {
        "ln1g": jnp.ones((C,), jnp.float32),
        "ln1b": jnp.zeros((C,), jnp.float32),
        "wq": s * jax.random.normal(ks[0], (C, C), jnp.float32),
        "wk": s * jax.random.normal(ks[1], (C, C), jnp.float32),
        "wv": s * jax.random.normal(ks[2], (C, C), jnp.float32),
        "wp": s * jax.random.normal(ks[3], (C, C), jnp.float32),
        "bp": s * jax.random.normal(ks[4], (C,), jnp.float32),
        "ln2g": jnp.ones((C,), jnp.float32),
        "ln2b": jnp.zeros((C,), jnp.float32),
        "w1": s * jax.random.normal(ks[5], (C, H), jnp.float32),
        "b1": s * jax.random.normal(ks[6], (H,), jnp.float32),
        "w2": s * jax.random.normal(ks[7], (H, C), jnp.float32),
        "b2": jnp.zeros((C,), jnp.float32),
    }


if __name__ == "__main__":
    key = jax.random.PRNGKey(0)
    pkey, xkey = jax.random.split(key)
    params = init_params(pkey)

    # T=24 with q_tile=16 exercises multiple query tiles, the KV-trim loop
    # (1 and 2 kv tiles) AND the padding path (T_pad=32); n_embd fixed at 192.
    B, T = 2, 24
    x = jax.random.normal(xkey, (B, T, N_EMBD), jnp.float32)

    out = transformer_block(x, params, q_tile=16)
    out = jax.block_until_ready(out)

    ref = reference_block(x, params)
    assert out.shape == (B, T, N_EMBD) and out.dtype == jnp.float32
    err = float(jnp.max(jnp.abs(out - ref)))
    # bf16 matmul operands (f32 accumulation) + approx reciprocal vs. f32
    # reference -> relaxed tolerance.
    assert err < 3e-2, err

    print("KERNEL_OK")
</pallas_src>

<mosaic_0001>
module attributes {stable_mosaic.version = 11 : i64} {
  func.func @qkv_kernel(%arg0: i32, %arg1: memref<1x32x192xf32, #tpu.memory_space<vmem>>, %arg2: memref<1x192xf32, #tpu.memory_space<vmem>>, %arg3: memref<1x192xf32, #tpu.memory_space<vmem>>, %arg4: memref<192x192xbf16, #tpu.memory_space<vmem>>, %arg5: memref<192x192xbf16, #tpu.memory_space<vmem>>, %arg6: memref<192x192xbf16, #tpu.memory_space<vmem>>, %arg7: memref<1x6x32x32xbf16, #tpu.memory_space<vmem>>, %arg8: memref<1x6x32x32xbf16, #tpu.memory_space<vmem>>, %arg9: memref<1x6x32x32xbf16, #tpu.memory_space<vmem>>) attributes {dimension_semantics = [#tpu.dimension_semantics<parallel>], iteration_bounds = array<i64: 2>, scalar_prefetch = 0 : i64, scratch_operands = 0 : i64, tpu.core_type = #tpu.core_type<tc>, window_params = [{transform_indices = @transform_0, window_bounds = array<i64: 1, 32, 192>}, {pipeline_mode = #tpu.pipeline_mode<synchronous>, transform_indices = @transform_1, window_bounds = array<i64: 1, 192>}, {pipeline_mode = #tpu.pipeline_mode<synchronous>, transform_indices = @transform_2, window_bounds = array<i64: 1, 192>}, {pipeline_mode = #tpu.pipeline_mode<synchronous>, transform_indices = @transform_3, window_bounds = array<i64: 192, 192>}, {pipeline_mode = #tpu.pipeline_mode<synchronous>, transform_indices = @transform_4, window_bounds = array<i64: 192, 192>}, {pipeline_mode = #tpu.pipeline_mode<synchronous>, transform_indices = @transform_5, window_bounds = array<i64: 192, 192>}, {transform_indices = @transform_6, window_bounds = array<i64: 1, 6, 32, 32>}, {transform_indices = @transform_7, window_bounds = array<i64: 1, 6, 32, 32>}, {transform_indices = @transform_8, window_bounds = array<i64: 1, 6, 32, 32>}]} {
    %c0 = arith.constant 0 : index
    %c0_0 = arith.constant 0 : index
    %c0_1 = arith.constant 0 : index
    %0 = vector.load %arg1[%c0, %c0_0, %c0_1] : memref<1x32x192xf32, #tpu.memory_space<vmem>>, vector<1x32x192xf32>
    %1 = vector.shape_cast %0 : vector<1x32x192xf32> to vector<32x192xf32>
    %c0_2 = arith.constant 0 : index
    %c0_3 = arith.constant 0 : index
    %2 = vector.load %arg2[%c0_2, %c0_3] : memref<1x192xf32, #tpu.memory_space<vmem>>, vector<1x192xf32>
    %3 = vector.shape_cast %2 : vector<1x192xf32> to vector<192xf32>
    %c0_4 = arith.constant 0 : index
    %c0_5 = arith.constant 0 : index
    %4 = vector.load %arg3[%c0_4, %c0_5] : memref<1x192xf32, #tpu.memory_space<vmem>>, vector<1x192xf32>
    %5 = vector.shape_cast %4 : vector<1x192xf32> to vector<192xf32>
    %cst = arith.constant dense<0.000000e+00> : vector<32xf32>
    %6 = vector.multi_reduction <add>, %1, %cst [1] : vector<32x192xf32> to vector<32xf32>
    %7 = vector.shape_cast %6 : vector<32xf32> to vector<32x1xf32>
    %cst_6 = arith.constant 1.920000e+02 : f32
    %8 = vector.broadcast %cst_6 : f32 to vector<32x1xf32>
    %9 = arith.divf %7, %8 : vector<32x1xf32>
    %10 = vector.broadcast %9 : vector<32x1xf32> to vector<32x192xf32>
    %11 = arith.subf %1, %10 : vector<32x192xf32>
    %12 = arith.mulf %11, %11 : vector<32x192xf32>
    %cst_7 = arith.constant dense<0.000000e+00> : vector<32xf32>
    %13 = vector.multi_reduction <add>, %12, %cst_7 [1] : vector<32x192xf32> to vector<32xf32>
    %14 = vector.shape_cast %13 : vector<32xf32> to vector<32x1xf32>
    %cst_8 = arith.constant 1.920000e+02 : f32
    %15 = vector.broadcast %cst_8 : f32 to vector<32x1xf32>
    %16 = arith.divf %14, %15 : vector<32x1xf32>
    %17 = vector.broadcast %9 : vector<32x1xf32> to vector<32x192xf32>
    %18 = arith.subf %1, %17 : vector<32x192xf32>
    %cst_9 = arith.constant 9.99999974E-6 : f32
    %19 = vector.broadcast %cst_9 : f32 to vector<32x1xf32>
    %20 = arith.addf %16, %19 : vector<32x1xf32>
    %21 = math.rsqrt %20 : vector<32x1xf32>
    %22 = vector.broadcast %21 : vector<32x1xf32> to vector<32x192xf32>
    %23 = arith.mulf %18, %22 : vector<32x192xf32>
    %24 = vector.shape_cast %3 : vector<192xf32> to vector<1x192xf32>
    %25 = vector.broadcast %24 : vector<1x192xf32> to vector<32x192xf32>
    %26 = arith.mulf %23, %25 : vector<32x192xf32>
    %27 = vector.shape_cast %5 : vector<192xf32> to vector<1x192xf32>
    %28 = vector.broadcast %27 : vector<1x192xf32> to vector<32x192xf32>
    %29 = arith.addf %26, %28 : vector<32x192xf32>
    %30 = arith.truncf %29 : vector<32x192xf32> to vector<32x192xbf16>
    %c0_10 = arith.constant 0 : index
    %c0_11 = arith.constant 0 : index
    %31 = vector.load %arg4[%c0_10, %c0_11] : memref<192x192xbf16, #tpu.memory_space<vmem>>, vector<192x192xbf16>
    %cst_12 = arith.constant dense<0.000000e+00> : vector<32x192xf32>
    %32 = tpu.matmul %30, %31, %cst_12 {dimension_numbers = #tpu.dot_dimension_numbers<[1], [0], [0], [1], [0, 0, 1, 1], [], []>} : vector<32x192xbf16>, vector<192x192xbf16>, vector<32x192xf32> -> vector<32x192xf32>
    %cst_13 = arith.constant 0.176776692 : f32
    %33 = vector.broadcast %cst_13 : f32 to vector<32x192xf32>
    %34 = arith.mulf %32, %33 : vector<32x192xf32>
    %35 = arith.truncf %34 : vector<32x192xf32> to vector<32x192xbf16>
    %c0_14 = arith.constant 0 : index
    %c0_15 = arith.constant 0 : index
    %36 = vector.load %arg5[%c0_14, %c0_15] : memref<192x192xbf16, #tpu.memory_space<vmem>>, vector<192x192xbf16>
    %cst_16 = arith.constant dense<0.000000e+00> : vector<32x192xf32>
    %37 = tpu.matmul %30, %36, %cst_16 {dimension_numbers = #tpu.dot_dimension_numbers<[1], [0], [0], [1], [0, 0, 1, 1], [], []>} : vector<32x192xbf16>, vector<192x192xbf16>, vector<32x192xf32> -> vector<32x192xf32>
    %38 = arith.truncf %37 : vector<32x192xf32> to vector<32x192xbf16>
    %c0_17 = arith.constant 0 : index
    %c0_18 = arith.constant 0 : index
    %39 = vector.load %arg6[%c0_17, %c0_18] : memref<192x192xbf16, #tpu.memory_space<vmem>>, vector<192x192xbf16>
    %cst_19 = arith.constant dense<0.000000e+00> : vector<32x192xf32>
    %40 = tpu.matmul %30, %39, %cst_19 {dimension_numbers = #tpu.dot_dimension_numbers<[1], [0], [0], [1], [0, 0, 1, 1], [], []>} : vector<32x192xbf16>, vector<192x192xbf16>, vector<32x192xf32> -> vector<32x192xf32>
    %41 = arith.truncf %40 : vector<32x192xf32> to vector<32x192xbf16>
    %42 = vector.extract_strided_slice %35 {offsets = [0, 0], sizes = [32, 32], strides = [1, 1]} : vector<32x192xbf16> to vector<32x32xbf16>
    %c0_20 = arith.constant 0 : index
    %c0_21 = arith.constant 0 : index
    %c0_22 = arith.constant 0 : index
    %c0_23 = arith.constant 0 : index
    %43 = vector.load %arg7[%c0_20, %c0_21, %c0_22, %c0_23] : memref<1x6x32x32xbf16, #tpu.memory_space<vmem>>, vector<1x1x32x32xbf16>
    %44 = vector.shape_cast %43 : vector<1x1x32x32xbf16> to vector<32x32xbf16>
    %45 = vector.shape_cast %42 : vector<32x32xbf16> to vector<1x1x32x32xbf16>
    tpu.vector_store %arg7[%c0_20, %c0_21, %c0_22, %c0_23], %45 {strides = array<i32>} : memref<1x6x32x32xbf16, #tpu.memory_space<vmem>>, vector<1x1x32x32xbf16>,
    %46 = vector.extract_strided_slice %38 {offsets = [0, 0], sizes = [32, 32], strides = [1, 1]} : vector<32x192xbf16> to vector<32x32xbf16>
    %c0_24 = arith.constant 0 : index
    %c0_25 = arith.constant 0 : index
    %c0_26 = arith.constant 0 : index
    %c0_27 = arith.constant 0 : index
    %47 = vector.load %arg8[%c0_24, %c0_25, %c0_26, %c0_27] : memref<1x6x32x32xbf16, #tpu.memory_space<vmem>>, vector<1x1x32x32xbf16>
    %48 = vector.shape_cast %47 : vector<1x1x32x32xbf16> to vector<32x32xbf16>
    %49 = vector.shape_cast %46 : vector<32x32xbf16> to vector<1x1x32x32xbf16>
    tpu.vector_store %arg8[%c0_24, %c0_25, %c0_26, %c0_27], %49 {strides = array<i32>} : memref<1x6x32x32xbf16, #tpu.memory_space<vmem>>, vector<1x1x32x32xbf16>,
    %50 = vector.extract_strided_slice %41 {offsets = [0, 0], sizes = [32, 32], strides = [1, 1]} : vector<32x192xbf16> to vector<32x32xbf16>
    %c0_28 = arith.constant 0 : index
    %c0_29 = arith.constant 0 : index
    %c0_30 = arith.constant 0 : index
    %c0_31 = arith.constant 0 : index
    %51 = vector.load %arg9[%c0_28, %c0_29, %c0_30, %c0_31] : memref<1x6x32x32xbf16, #tpu.memory_space<vmem>>, vector<1x1x32x32xbf16>
    %52 = vector.shape_cast %51 : vector<1x1x32x32xbf16> to vector<32x32xbf16>
    %53 = vector.shape_cast %50 : vector<32x32xbf16> to vector<1x1x32x32xbf16>
    tpu.vector_store %arg9[%c0_28, %c0_29, %c0_30, %c0_31], %53 {strides = array<i32>} : memref<1x6x32x32xbf16, #tpu.memory_space<vmem>>, vector<1x1x32x32xbf16>,
    %54 = vector.extract_strided_slice %35 {offsets = [0, 32], sizes = [32, 32], strides = [1, 1]} : vector<32x192xbf16> to vector<32x32xbf16>
    %c0_32 = arith.constant 0 : index
    %c1 = arith.constant 1 : index
    %c0_33 = arith.constant 0 : index
    %c0_34 = arith.constant 0 : index
    %55 = vector.load %arg7[%c0_32, %c1, %c0_33, %c0_34] : memref<1x6x32x32xbf16, #tpu.memory_space<vmem>>, vector<1x1x32x32xbf16>
    %56 = vector.shape_cast %55 : vector<1x1x32x32xbf16> to vector<32x32xbf16>
    %57 = vector.shape_cast %54 : vector<32x32xbf16> to vector<1x1x32x32xbf16>
    tpu.vector_store %arg7[%c0_32, %c1, %c0_33, %c0_34], %57 {strides = array<i32>} : memref<1x6x32x32xbf16, #tpu.memory_space<vmem>>, vector<1x1x32x32xbf16>,
    %58 = vector.extract_strided_slice %38 {offsets = [0, 32], sizes = [32, 32], strides = [1, 1]} : vector<32x192xbf16> to vector<32x32xbf16>
    %c0_35 = arith.constant 0 : index
    %c1_36 = arith.constant 1 : index
    %c0_37 = arith.constant 0 : index
    %c0_38 = arith.constant 0 : index
    %59 = vector.load %arg8[%c0_35, %c1_36, %c0_37, %c0_38] : memref<1x6x32x32xbf16, #tpu.memory_space<vmem>>, vector<1x1x32x32xbf16>
    %60 = vector.shape_cast %59 : vector<1x1x32x32xbf16> to vector<32x32xbf16>
    %61 = vector.shape_cast %58 : vector<32x32xbf16> to vector<1x1x32x32xbf16>
    tpu.vector_store %arg8[%c0_35, %c1_36, %c0_37, %c0_38], %61 {strides = array<i32>} : memref<1x6x32x32xbf16, #tpu.memory_space<vmem>>, vector<1x1x32x32xbf16>,
    %62 = vector.extract_strided_slice %41 {offsets = [0, 32], sizes = [32, 32], strides = [1, 1]} : vector<32x192xbf16> to vector<32x32xbf16>
    %c0_39 = arith.constant 0 : index
    %c1_40 = arith.constant 1 : index
    %c0_41 = arith.constant 0 : index
    %c0_42 = arith.constant 0 : index
    %63 = vector.load %arg9[%c0_39, %c1_40, %c0_41, %c0_42] : memref<1x6x32x32xbf16, #tpu.memory_space<vmem>>, vector<1x1x32x32xbf16>
    %64 = vector.shape_cast %63 : vector<1x1x32x32xbf16> to vector<32x32xbf16>
    %65 = vector.shape_cast %62 : vector<32x32xbf16> to vector<1x1x32x32xbf16>
    tpu.vector_store %arg9[%c0_39, %c1_40, %c0_41, %c0_42], %65 {strides = array<i32>} : memref<1x6x32x32xbf16, #tpu.memory_space<vmem>>, vector<1x1x32x32xbf16>,
    %66 = vector.extract_strided_slice %35 {offsets = [0, 64], sizes = [32, 32], strides = [1, 1]} : vector<32x192xbf16> to vector<32x32xbf16>
    %c0_43 = arith.constant 0 : index
    %c2 = arith.constant 2 : index
    %c0_44 = arith.constant 0 : index
    %c0_45 = arith.constant 0 : index
    %67 = vector.load %arg7[%c0_43, %c2, %c0_44, %c0_45] : memref<1x6x32x32xbf16, #tpu.memory_space<vmem>>, vector<1x1x32x32xbf16>
    %68 = vector.shape_cast %67 : vector<1x1x32x32xbf16> to vector<32x32xbf16>
    %69 = vector.shape_cast %66 : vector<32x32xbf16> to vector<1x1x32x32xbf16>
    tpu.vector_store %arg7[%c0_43, %c2, %c0_44, %c0_45], %69 {strides = array<i32>} : memref<1x6x32x32xbf16, #tpu.memory_space<vmem>>, vector<1x1x32x32xbf16>,
    %70 = vector.extract_strided_slice %38 {offsets = [0, 64], sizes = [32, 32], strides = [1, 1]} : vector<32x192xbf16> to vector<32x32xbf16>
    %c0_46 = arith.constant 0 : index
    %c2_47 = arith.constant 2 : index
    %c0_48 = arith.constant 0 : index
    %c0_49 = arith.constant 0 : index
    %71 = vector.load %arg8[%c0_46, %c2_47, %c0_48, %c0_49] : memref<1x6x32x32xbf16, #tpu.memory_space<vmem>>, vector<1x1x32x32xbf16>
    %72 = vector.shape_cast %71 : vector<1x1x32x32xbf16> to vector<32x32xbf16>
    %73 = vector.shape_cast %70 : vector<32x32xbf16> to vector<1x1x32x32xbf16>
    tpu.vector_store %arg8[%c0_46, %c2_47, %c0_48, %c0_49], %73 {strides = array<i32>} : memref<1x6x32x32xbf16, #tpu.memory_space<vmem>>, vector<1x1x32x32xbf16>,
    %74 = vector.extract_strided_slice %41 {offsets = [0, 64], sizes = [32, 32], strides = [1, 1]} : vector<32x192xbf16> to vector<32x32xbf16>
    %c0_50 = arith.constant 0 : index
    %c2_51 = arith.constant 2 : index
    %c0_52 = arith.constant 0 : index
    %c0_53 = arith.constant 0 : index
    %75 = vector.load %arg9[%c0_50, %c2_51, %c0_52, %c0_53] : memref<1x6x32x32xbf16, #tpu.memory_space<vmem>>, vector<1x1x32x32xbf16>
    %76 = vector.shape_cast %75 : vector<1x1x32x32xbf16> to vector<32x32xbf16>
    %77 = vector.shape_cast %74 : vector<32x32xbf16> to vector<1x1x32x32xbf16>
    tpu.vector_store %arg9[%c0_50, %c2_51, %c0_52, %c0_53], %77 {strides = array<i32>} : memref<1x6x32x32xbf16, #tpu.memory_space<vmem>>, vector<1x1x32x32xbf16>,
    %78 = vector.extract_strided_slice %35 {offsets = [0, 96], sizes = [32, 32], strides = [1, 1]} : vector<32x192xbf16> to vector<32x32xbf16>
    %c0_54 = arith.constant 0 : index
    %c3 = arith.constant 3 : index
    %c0_55 = arith.constant 0 : index
    %c0_56 = arith.constant 0 : index
    %79 = vector.load %arg7[%c0_54, %c3, %c0_55, %c0_56] : memref<1x6x32x32xbf16, #tpu.memory_space<vmem>>, vector<1x1x32x32xbf16>
    %80 = vector.shape_cast %79 : vector<1x1x32x32xbf16> to vector<32x32xbf16>
    %81 = vector.shape_cast %78 : vector<32x32xbf16> to vector<1x1x32x32xbf16>
    tpu.vector_store %arg7[%c0_54, %c3, %c0_55, %c0_56], %81 {strides = array<i32>} : memref<1x6x32x32xbf16, #tpu.memory_space<vmem>>, vector<1x1x32x32xbf16>,
    %82 = vector.extract_strided_slice %38 {offsets = [0, 96], sizes = [32, 32], strides = [1, 1]} : vector<32x192xbf16> to vector<32x32xbf16>
    %c0_57 = arith.constant 0 : index
    %c3_58 = arith.constant 3 : index
    %c0_59 = arith.constant 0 : index
    %c0_60 = arith.constant 0 : index
    %83 = vector.load %arg8[%c0_57, %c3_58, %c0_59, %c0_60] : memref<1x6x32x32xbf16, #tpu.memory_space<vmem>>, vector<1x1x32x32xbf16>
    %84 = vector.shape_cast %83 : vector<1x1x32x32xbf16> to vector<32x32xbf16>
    %85 = vector.shape_cast %82 : vector<32x32xbf16> to vector<1x1x32x32xbf16>
    tpu.vector_store %arg8[%c0_57, %c3_58, %c0_59, %c0_60], %85 {strides = array<i32>} : memref<1x6x32x32xbf16, #tpu.memory_space<vmem>>, vector<1x1x32x32xbf16>,
    %86 = vector.extract_strided_slice %41 {offsets = [0, 96], sizes = [32, 32], strides = [1, 1]} : vector<32x192xbf16> to vector<32x32xbf16>
    %c0_61 = arith.constant 0 : index
    %c3_62 = arith.constant 3 : index
    %c0_63 = arith.constant 0 : index
    %c0_64 = arith.constant 0 : index
    %87 = vector.load %arg9[%c0_61, %c3_62, %c0_63, %c0_64] : memref<1x6x32x32xbf16, #tpu.memory_space<vmem>>, vector<1x1x32x32xbf16>
    %88 = vector.shape_cast %87 : vector<1x1x32x32xbf16> to vector<32x32xbf16>
    %89 = vector.shape_cast %86 : vector<32x32xbf16> to vector<1x1x32x32xbf16>
    tpu.vector_store %arg9[%c0_61, %c3_62, %c0_63, %c0_64], %89 {strides = array<i32>} : memref<1x6x32x32xbf16, #tpu.memory_space<vmem>>, vector<1x1x32x32xbf16>,
    %90 = vector.extract_strided_slice %35 {offsets = [0, 128], sizes = [32, 32], strides = [1, 1]} : vector<32x192xbf16> to vector<32x32xbf16>
    %c0_65 = arith.constant 0 : index
    %c4 = arith.constant 4 : index
    %c0_66 = arith.constant 0 : index
    %c0_67 = arith.constant 0 : index
    %91 = vector.load %arg7[%c0_65, %c4, %c0_66, %c0_67] : memref<1x6x32x32xbf16, #tpu.memory_space<vmem>>, vector<1x1x32x32xbf16>
    %92 = vector.shape_cast %91 : vector<1x1x32x32xbf16> to vector<32x32xbf16>
    %93 = vector.shape_cast %90 : vector<32x32xbf16> to vector<1x1x32x32xbf16>
    tpu.vector_store %arg7[%c0_65, %c4, %c0_66, %c0_67], %93 {strides = array<i32>} : memref<1x6x32x32xbf16, #tpu.memory_space<vmem>>, vector<1x1x32x32xbf16>,
    %94 = vector.extract_strided_slice %38 {offsets = [0, 128], sizes = [32, 32], strides = [1, 1]} : vector<32x192xbf16> to vector<32x32xbf16>
    %c0_68 = arith.constant 0 : index
    %c4_69 = arith.constant 4 : index
    %c0_70 = arith.constant 0 : index
    %c0_71 = arith.constant 0 : index
    %95 = vector.load %arg8[%c0_68, %c4_69, %c0_70, %c0_71] : memref<1x6x32x32xbf16, #tpu.memory_space<vmem>>, vector<1x1x32x32xbf16>
    %96 = vector.shape_cast %95 : vector<1x1x32x32xbf16> to vector<32x32xbf16>
    %97 = vector.shape_cast %94 : vector<32x32xbf16> to vector<1x1x32x32xbf16>
    tpu.vector_store %arg8[%c0_68, %c4_69, %c0_70, %c0_71], %97 {strides = array<i32>} : memref<1x6x32x32xbf16, #tpu.memory_space<vmem>>, vector<1x1x32x32xbf16>,
    %98 = vector.extract_strided_slice %41 {offsets = [0, 128], sizes = [32, 32], strides = [1, 1]} : vector<32x192xbf16> to vector<32x32xbf16>
    %c0_72 = arith.constant 0 : index
    %c4_73 = arith.constant 4 : index
    %c0_74 = arith.constant 0 : index
    %c0_75 = arith.constant 0 : index
    %99 = vector.load %arg9[%c0_72, %c4_73, %c0_74, %c0_75] : memref<1x6x32x32xbf16, #tpu.memory_space<vmem>>, vector<1x1x32x32xbf16>
    %100 = vector.shape_cast %99 : vector<1x1x32x32xbf16> to vector<32x32xbf16>
    %101 = vector.shape_cast %98 : vector<32x32xbf16> to vector<1x1x32x32xbf16>
    tpu.vector_store %arg9[%c0_72, %c4_73, %c0_74, %c0_75], %101 {strides = array<i32>} : memref<1x6x32x32xbf16, #tpu.memory_space<vmem>>, vector<1x1x32x32xbf16>,
    %102 = vector.extract_strided_slice %35 {offsets = [0, 160], sizes = [32, 32], strides = [1, 1]} : vector<32x192xbf16> to vector<32x32xbf16>
    %c0_76 = arith.constant 0 : index
    %c5 = arith.constant 5 : index
    %c0_77 = arith.constant 0 : index
    %c0_78 = arith.constant 0 : index
    %103 = vector.load %arg7[%c0_76, %c5, %c0_77, %c0_78] : memref<1x6x32x32xbf16, #tpu.memory_space<vmem>>, vector<1x1x32x32xbf16>
    %104 = vector.shape_cast %103 : vector<1x1x32x32xbf16> to vector<32x32xbf16>
    %105 = vector.shape_cast %102 : vector<32x32xbf16> to vector<1x1x32x32xbf16>
    tpu.vector_store %arg7[%c0_76, %c5, %c0_77, %c0_78], %105 {strides = array<i32>} : memref<1x6x32x32xbf16, #tpu.memory_space<vmem>>, vector<1x1x32x32xbf16>,
    %106 = vector.extract_strided_slice %38 {offsets = [0, 160], sizes = [32, 32], strides = [1, 1]} : vector<32x192xbf16> to vector<32x32xbf16>
    %c0_79 = arith.constant 0 : index
    %c5_80 = arith.constant 5 : index
    %c0_81 = arith.constant 0 : index
    %c0_82 = arith.constant 0 : index
    %107 = vector.load %arg8[%c0_79, %c5_80, %c0_81, %c0_82] : memref<1x6x32x32xbf16, #tpu.memory_space<vmem>>, vector<1x1x32x32xbf16>
    %108 = vector.shape_cast %107 : vector<1x1x32x32xbf16> to vector<32x32xbf16>
    %109 = vector.shape_cast %106 : vector<32x32xbf16> to vector<1x1x32x32xbf16>
    tpu.vector_store %arg8[%c0_79, %c5_80, %c0_81, %c0_82], %109 {strides = array<i32>} : memref<1x6x32x32xbf16, #tpu.memory_space<vmem>>, vector<1x1x32x32xbf16>,
    %110 = vector.extract_strided_slice %41 {offsets = [0, 160], sizes = [32, 32], strides = [1, 1]} : vector<32x192xbf16> to vector<32x32xbf16>
    %c0_83 = arith.constant 0 : index
    %c5_84 = arith.constant 5 : index
    %c0_85 = arith.constant 0 : index
    %c0_86 = arith.constant 0 : index
    %111 = vector.load %arg9[%c0_83, %c5_84, %c0_85, %c0_86] : memref<1x6x32x32xbf16, #tpu.memory_space<vmem>>, vector<1x1x32x32xbf16>
    %112 = vector.shape_cast %111 : vector<1x1x32x32xbf16> to vector<32x32xbf16>
    %113 = vector.shape_cast %110 : vector<32x32xbf16> to vector<1x1x32x32xbf16>
    tpu.vector_store %arg9[%c0_83, %c5_84, %c0_85, %c0_86], %113 {strides = array<i32>} : memref<1x6x32x32xbf16, #tpu.memory_space<vmem>>, vector<1x1x32x32xbf16>,
    return
  }
  func.func @transform_0(%arg0: i32) -> (i32, i32, i32) {
    %c0_i32 = arith.constant 0 : i32
    %c0_i32_0 = arith.constant 0 : i32
    %c0_i32_1 = arith.constant 0 : i32
    return %arg0, %c0_i32, %c0_i32_0 : i32, i32, i32
  }
  func.func @transform_1(%arg0: i32) -> (i32, i32) {
    %c0_i32 = arith.constant 0 : i32
    %c0_i32_0 = arith.constant 0 : i32
    %c0_i32_1 = arith.constant 0 : i32
    return %c0_i32, %c0_i32_0 : i32, i32
  }
  func.func @transform_2(%arg0: i32) -> (i32, i32) {
    %c0_i32 = arith.constant 0 : i32
    %c0_i32_0 = arith.constant 0 : i32
    %c0_i32_1 = arith.constant 0 : i32
    return %c0_i32, %c0_i32_0 : i32, i32
  }
  func.func @transform_3(%arg0: i32) -> (i32, i32) {
    %c0_i32 = arith.constant 0 : i32
    %c0_i32_0 = arith.constant 0 : i32
    %c0_i32_1 = arith.constant 0 : i32
    return %c0_i32, %c0_i32_0 : i32, i32
  }
  func.func @transform_4(%arg0: i32) -> (i32, i32) {
    %c0_i32 = arith.constant 0 : i32
    %c0_i32_0 = arith.constant 0 : i32
    %c0_i32_1 = arith.constant 0 : i32
    return %c0_i32, %c0_i32_0 : i32, i32
  }
  func.func @transform_5(%arg0: i32) -> (i32, i32) {
    %c0_i32 = arith.constant 0 : i32
    %c0_i32_0 = arith.constant 0 : i32
    %c0_i32_1 = arith.constant 0 : i32
    return %c0_i32, %c0_i32_0 : i32, i32
  }
  func.func @transform_6(%arg0: i32) -> (i32, i32, i32, i32) {
    %c0_i32 = arith.constant 0 : i32
    %c0_i32_0 = arith.constant 0 : i32
    %c0_i32_1 = arith.constant 0 : i32
    %c0_i32_2 = arith.constant 0 : i32
    return %arg0, %c0_i32, %c0_i32_0, %c0_i32_1 : i32, i32, i32, i32
  }
  func.func @transform_7(%arg0: i32) -> (i32, i32, i32, i32) {
    %c0_i32 = arith.constant 0 : i32
    %c0_i32_0 = arith.constant 0 : i32
    %c0_i32_1 = arith.constant 0 : i32
    %c0_i32_2 = arith.constant 0 : i32
    return %arg0, %c0_i32, %c0_i32_0, %c0_i32_1 : i32, i32, i32, i32
  }
  func.func @transform_8(%arg0: i32) -> (i32, i32, i32, i32) {
    %c0_i32 = arith.constant 0 : i32
    %c0_i32_0 = arith.constant 0 : i32
    %c0_i32_1 = arith.constant 0 : i32
    %c0_i32_2 = arith.constant 0 : i32
    return %arg0, %c0_i32, %c0_i32_0, %c0_i32_1 : i32, i32, i32, i32
  }
}

</mosaic_0001>

<llo_original>
// kernel: tpu_custom_call.1
$region0: #{tpu_custom_call.1}
  #allocation0 [shape = 'u32[]', space=smem, size = 0x4, offset = 0x4, fixed_abs, tag = 'smem constant byte address 0x4 - core index']
  #allocation1 [shape = 'u32[144,128]{1,0:T(1,128)}', space=vmem, size = 0x12000, scoped, tag = 'internal scratch']
  %s0 = inlined_call_operand.hbm [shape: f32[2,32,192], index: 0, kind: input, shape index: {}]
  %s1 = inlined_call_operand.vmem [shape: f32[1,192], index: 1, kind: input, shape index: {}]
  %s2 = inlined_call_operand.vmem [shape: f32[1,192], index: 2, kind: input, shape index: {}]
  %s3 = inlined_call_operand.hbm [shape: bf16[192,192], index: 3, kind: input, shape index: {}]
  %s4 = inlined_call_operand.hbm [shape: bf16[192,192], index: 4, kind: input, shape index: {}]
  %s5 = inlined_call_operand.hbm [shape: bf16[192,192], index: 5, kind: input, shape index: {}]
  %s6 = inlined_call_operand.hbm [shape: bf16[2,6,32,32], index: 6, kind: output, shape index: {0}]
  %s7 = inlined_call_operand.hbm [shape: bf16[2,6,32,32], index: 7, kind: output, shape index: {1}]
  %s8 = inlined_call_operand.hbm [shape: bf16[2,6,32,32], index: 8, kind: output, shape index: {2}]
  %9 = xla_tuple %s6, %s7, %s8
  %s10 = sld [smem:[#allocation0]]
  $region89: #{tpu_custom_call.1} parent=0
    _
  %s12 = ssub.s32 1, %s10
  %s13 = scalar_select 0, %s12, %s10
  $region1: #{tpu_custom_call.1} parent=0
    #allocation2 [shape = 'u8[65536]{0}', space=vmem, size = 0x10000, scoped, tag = 'input window, operand 0']
    #allocation3 [shape = 's32[2]{0}', space=sflag, size = 0x8, scoped, tag = 'scoped memory for tpu_custom_call.1']
    #allocation4 [shape = 's32[2]{0}', space=sflag, size = 0x8, scoped, tag = 'scoped memory for tpu_custom_call.1']
    #allocation5 [shape = 'u8[98304]{0}', space=vmem, size = 0x18000, scoped, tag = 'input window, operand 3, single buffered']
    #allocation6 [shape = 's32[1]{0}', space=sflag, size = 0x4, scoped, tag = 'scoped memory for tpu_custom_call.1']
    #allocation7 [shape = 'u8[98304]{0}', space=vmem, size = 0x18000, scoped, tag = 'input window, operand 4, single buffered']
    #allocation8 [shape = 'u8[98304]{0}', space=vmem, size = 0x18000, scoped, tag = 'input window, operand 5, single buffered']
    #allocation9 [shape = 's32[1]{0}', space=sflag, size = 0x4, scoped, tag = 'scoped memory for tpu_custom_call.1']
    #allocation10 [shape = 'u8[98304]{0}', space=vmem, size = 0x18000, scoped, tag = 'output window, operand 0']
    #allocation11 [shape = 'u8[98304]{0}', space=vmem, size = 0x18000, scoped, tag = 'output window, operand 1']
    #allocation12 [shape = 's32[2]{0}', space=sflag, size = 0x8, scoped, tag = 'scoped memory for tpu_custom_call.1']
    #allocation13 [shape = 'u8[98304]{0}', space=vmem, size = 0x18000, scoped, tag = 'output window, operand 2']
    %14 = vsyncpa [#allocation3], 0
    %s15 = scalar_lea.sflag [#allocation3], 1
    %16 = vsyncpa %s15, 0
    %17 = vsyncpa [#allocation6], 0
    %18 = vsyncpa [#allocation9], 0
    %19 = vsyncpa [#allocation4], 0
    %s20 = scalar_lea.sflag [#allocation4], 1
    %21 = vsyncpa %s20, 0
    %22 = vsyncpa [#allocation12], 0
    %s23 = scalar_lea.sflag [#allocation12], 1
    %24 = vsyncpa %s23, 0
    loop: start=0, step=1, limit=4
    $region2: #{tpu_custom_call.1} parent=1 // loop_pre_header
      _
    $region3: #{tpu_custom_call.1} parent=1 // loop_header
      %s26 = sphi 0, %s30
      %p27 = scmp.ge.s32.totalorder %s26, 4
      %s36 = sphi 0, %s38
      %s39 = sphi 0, %s36
      %s40 = sphi 0, %s39
      %s56 = sphi 0, %s40
      %s60 = sphi 0, %s60
      %s62 = sphi 0, %s60
      %s63 = sphi 0, %s62
      %s77 = sphi 0, %s63
      %s81 = sphi 0, %s81
      %s83 = sphi 0, %s81
      %s84 = sphi 0, %s83
      %s98 = sphi 0, %s84
      %s102 = sphi 0, %s102
      %s104 = sphi 0, %s102
      %s105 = sphi 0, %s104
      %s119 = sphi 0, %s105
      %s123 = sphi 0, %s123
      %s125 = sphi 0, %s123
      %s126 = sphi 0, %s125
      %s140 = sphi 0, %s126
      %s144 = sphi 0, %s144
      %s146 = sphi 0, %s144
      %s147 = sphi 0, %s146
      %s161 = sphi 0, %s147
      %s167 = sphi 0, %s169
      %s170 = sphi 0, %s167
      %s171 = sphi 0, %s170
      %s187 = sphi 0, %s171
      %s193 = sphi 0, %s195
      %s196 = sphi 0, %s193
      %s197 = sphi 0, %s196
      %s213 = sphi 0, %s197
      %s219 = sphi 0, %s221
      %s222 = sphi 0, %s219
      %s223 = sphi 0, %s222
      %s239 = sphi 0, %s223
    $region4: #{tpu_custom_call.1} parent=1 // loop_header_branch
      %29 = sbr.rel (%p27) target = $region8
    $region5: #{tpu_custom_call.1} parent=1 // loop_body
      %s31 = ssub.s32 %s26, 1
      %s32 = ssub.s32 %s26, 2
      %s33 = sadd.s32 %s26, 1
      %s34 = ssub.s32 %s26, %s33
      %p35 = scmp.eq.s32.totalorder %s34, 0
      %s37 = sadd.s32 %s36, 1
      %s38 = scalar_select %p35, %s36, %s37
      %p41 = pneg %p35
      %p42 = scmp.eq.s32.totalorder %s26, 1
      %p43 = por %p41, %p42
      %p44 = scmp.ne.s32.totalorder %s36, %s39
      %p45 = scmp.eq.s32.totalorder %s26, 0
      %p46 = por %p44, %p45
      %p47 = scmp.ne.s32.totalorder %s36, %s39
      %p48 = scmp.eq.s32.totalorder %s31, 1
      %p49 = por %p47, %p48
      %p50 = scmp.ne.s32.totalorder %s39, %s40
      %p51 = scmp.eq.s32.totalorder %s31, 0
      %p52 = por %p50, %p51
      %p53 = scmp.ne.s32.totalorder %s39, %s40
      %p54 = scmp.eq.s32.totalorder %s32, 1
      %p55 = por %p53, %p54
      %p57 = scmp.ne.s32.totalorder %s40, %s56
      %p58 = scmp.eq.s32.totalorder %s32, 0
      %p59 = por %p57, %p58
      %s61 = sadd.s32 %s60, 1
      %p64 = scmp.eq.s32.totalorder %s26, 1
      %p65 = scmp.ne.s32.totalorder %s60, %s62
      %p66 = scmp.eq.s32.totalorder %s26, 0
      %p67 = por %p65, %p66
      %p68 = scmp.ne.s32.totalorder %s60, %s62
      %p69 = scmp.eq.s32.totalorder %s31, 1
      %p70 = por %p68, %p69
      %p71 = scmp.ne.s32.totalorder %s62, %s63
      %p72 = scmp.eq.s32.totalorder %s31, 0
      %p73 = por %p71, %p72
      %p74 = scmp.ne.s32.totalorder %s62, %s63
      %p75 = scmp.eq.s32.totalorder %s32, 1
      %p76 = por %p74, %p75
      %p78 = scmp.ne.s32.totalorder %s63, %s77
      %p79 = scmp.eq.s32.totalorder %s32, 0
      %p80 = por %p78, %p79
      %s82 = sadd.s32 %s81, 1
      %p85 = scmp.eq.s32.totalorder %s26, 1
      %p86 = scmp.ne.s32.totalorder %s81, %s83
      %p87 = scmp.eq.s32.totalorder %s26, 0
      %p88 = por %p86, %p87
      %p89 = scmp.ne.s32.totalorder %s81, %s83
      %p90 = scmp.eq.s32.totalorder %s31, 1
      %p91 = por %p89, %p90
      %p92 = scmp.ne.s32.totalorder %s83, %s84
      %p93 = scmp.eq.s32.totalorder %s31, 0
      %p94 = por %p92, %p93
      %p95 = scmp.ne.s32.totalorder %s83, %s84
      %p96 = scmp.eq.s32.totalorder %s32, 1
      %p97 = por %p95, %p96
      %p99 = scmp.ne.s32.totalorder %s84, %s98
      %p100 = scmp.eq.s32.totalorder %s32, 0
      %p101 = por %p99, %p100
      %s103 = sadd.s32 %s102, 1
      %p106 = scmp.eq.s32.totalorder %s26, 1
      %p107 = scmp.ne.s32.totalorder %s102, %s104
      %p108 = scmp.eq.s32.totalorder %s26, 0
      %p109 = por %p107, %p108
      %p110 = scmp.ne.s32.totalorder %s102, %s104
      %p111 = scmp.eq.s32.totalorder %s31, 1
      %p112 = por %p110, %p111
      %p113 = scmp.ne.s32.totalorder %s104, %s105
      %p114 = scmp.eq.s32.totalorder %s31, 0
      %p115 = por %p113, %p114
      %p116 = scmp.ne.s32.totalorder %s104, %s105
      %p117 = scmp.eq.s32.totalorder %s32, 1
      %p118 = por %p116, %p117
      %p120 = scmp.ne.s32.totalorder %s105, %s119
      %p121 = scmp.eq.s32.totalorder %s32, 0
      %p122 = por %p120, %p121
      %s124 = sadd.s32 %s123, 1
      %p127 = scmp.eq.s32.totalorder %s26, 1
      %p128 = scmp.ne.s32.totalorder %s123, %s125
      %p129 = scmp.eq.s32.totalorder %s26, 0
      %p130 = por %p128, %p129
      %p131 = scmp.ne.s32.totalorder %s123, %s125
      %p132 = scmp.eq.s32.totalorder %s31, 1
      %p133 = por %p131, %p132
      %p134 = scmp.ne.s32.totalorder %s125, %s126
      %p135 = scmp.eq.s32.totalorder %s31, 0
      %p136 = por %p134, %p135
      %p137 = scmp.ne.s32.totalorder %s125, %s126
      %p138 = scmp.eq.s32.totalorder %s32, 1
      %p139 = por %p137, %p138
      %p141 = scmp.ne.s32.totalorder %s126, %s140
      %p142 = scmp.eq.s32.totalorder %s32, 0
      %p143 = por %p141, %p142
      %s145 = sadd.s32 %s144, 1
      %p148 = scmp.eq.s32.totalorder %s26, 1
      %p149 = scmp.ne.s32.totalorder %s144, %s146
      %p150 = scmp.eq.s32.totalorder %s26, 0
      %p151 = por %p149, %p150
      %p152 = scmp.ne.s32.totalorder %s144, %s146
      %p153 = scmp.eq.s32.totalorder %s31, 1
      %p154 = por %p152, %p153
      %p155 = scmp.ne.s32.totalorder %s146, %s147
      %p156 = scmp.eq.s32.totalorder %s31, 0
      %p157 = por %p155, %p156
      %p158 = scmp.ne.s32.totalorder %s146, %s147
      %p159 = scmp.eq.s32.totalorder %s32, 1
      %p160 = por %p158, %p159
      %p162 = scmp.ne.s32.totalorder %s147, %s161
      %p163 = scmp.eq.s32.totalorder %s32, 0
      %p164 = por %p162, %p163
      %s165 = ssub.s32 %s26, %s33
      %p166 = scmp.eq.s32.totalorder %s165, 0
      %s168 = sadd.s32 %s167, 1
      %s169 = scalar_select %p166, %s167, %s168
      %p172 = pneg %p166
      %p173 = scmp.eq.s32.totalorder %s26, 1
      %p174 = por %p172, %p173
      %p175 = scmp.ne.s32.totalorder %s167, %s170
      %p176 = scmp.eq.s32.totalorder %s26, 0
      %p177 = por %p175, %p176
      %p178 = scmp.ne.s32.totalorder %s167, %s170
      %p179 = scmp.eq.s32.totalorder %s31, 1
      %p180 = por %p178, %p179
      %p181 = scmp.ne.s32.totalorder %s170, %s171
      %p182 = scmp.eq.s32.totalorder %s31, 0
      %p183 = por %p181, %p182
      %p184 = scmp.ne.s32.totalorder %s170, %s171
      %p185 = scmp.eq.s32.totalorder %s32, 1
      %p186 = por %p184, %p185
      %p188 = scmp.ne.s32.totalorder %s171, %s187
      %p189 = scmp.eq.s32.totalorder %s32, 0
      %p190 = por %p188, %p189
      %s191 = ssub.s32 %s26, %s33
      %p192 = scmp.eq.s32.totalorder %s191, 0
      %s194 = sadd.s32 %s193, 1
      %s195 = scalar_select %p192, %s193, %s194
      %p198 = pneg %p192
      %p199 = scmp.eq.s32.totalorder %s26, 1
      %p200 = por %p198, %p199
      %p201 = scmp.ne.s32.totalorder %s193, %s196
      %p202 = scmp.eq.s32.totalorder %s26, 0
      %p203 = por %p201, %p202
      %p204 = scmp.ne.s32.totalorder %s193, %s196
      %p205 = scmp.eq.s32.totalorder %s31, 1
      %p206 = por %p204, %p205
      %p207 = scmp.ne.s32.totalorder %s196, %s197
      %p208 = scmp.eq.s32.totalorder %s31, 0
      %p209 = por %p207, %p208
      %p210 = scmp.ne.s32.totalorder %s196, %s197
      %p211 = scmp.eq.s32.totalorder %s32, 1
      %p212 = por %p210, %p211
      %p214 = scmp.ne.s32.totalorder %s197, %s213
      %p215 = scmp.eq.s32.totalorder %s32, 0
      %p216 = por %p214, %p215
      %s217 = ssub.s32 %s26, %s33
      %p218 = scmp.eq.s32.totalorder %s217, 0
      %s220 = sadd.s32 %s219, 1
      %s221 = scalar_select %p218, %s219, %s220
      %p224 = pneg %p218
      %p225 = scmp.eq.s32.totalorder %s26, 1
      %p226 = por %p224, %p225
      %p227 = scmp.ne.s32.totalorder %s219, %s222
      %p228 = scmp.eq.s32.totalorder %s26, 0
      %p229 = por %p227, %p228
      %p230 = scmp.ne.s32.totalorder %s219, %s222
      %p231 = scmp.eq.s32.totalorder %s31, 1
      %p232 = por %p230, %p231
      %p233 = scmp.ne.s32.totalorder %s222, %s223
      %p234 = scmp.eq.s32.totalorder %s31, 0
      %p235 = por %p233, %p234
      %p236 = scmp.ne.s32.totalorder %s222, %s223
      %p237 = scmp.eq.s32.totalorder %s32, 1
      %p238 = por %p236, %p237
      %p240 = scmp.ne.s32.totalorder %s223, %s239
      %p241 = scmp.eq.s32.totalorder %s32, 0
      %p242 = por %p240, %p241
      %p243 = scmp.le.s32.totalorder 1, %s26
      %p244 = scmp.lt.s32.totalorder %s26, 3
      %p245 = pnand %p243, %p244
      %p246 = pneg %p245
      // Predicated region
      $region9: #{tpu_custom_call.1} parent=5 // pred_check
        _
      $region10: #{tpu_custom_call.1} parent=5 // pred_check_branch
        %248 = sbr.rel (%p245) target = $region12
      $region11: #{tpu_custom_call.1} parent=5 // pred_region
        %s249 = ssub.s32 %s26, 1
        // Predicated region
        $region13: #{tpu_custom_call.1} parent=11 // pred_check
          %p250 = pneg %p73
        $region14: #{tpu_custom_call.1} parent=11 // pred_check_branch
          %252 = sbr.rel (%p250) target = $region16
        $region15: #{tpu_custom_call.1} parent=11 // pred_region
          _
        $region16: #{tpu_custom_call.1} parent=11 // pred_fallthru
          _
        // Predicated region
        $region17: #{tpu_custom_call.1} parent=11 // pred_check
          %p253 = pneg %p94
        $region18: #{tpu_custom_call.1} parent=11 // pred_check_branch
          %255 = sbr.rel (%p253) target = $region20
        $region19: #{tpu_custom_call.1} parent=11 // pred_region
          _
        $region20: #{tpu_custom_call.1} parent=11 // pred_fallthru
          _
        // Predicated region
        $region21: #{tpu_custom_call.1} parent=11 // pred_check
          %p256 = pneg %p115
        $region22: #{tpu_custom_call.1} parent=11 // pred_check_branch
          %258 = sbr.rel (%p256) target = $region24
        $region23: #{tpu_custom_call.1} parent=11 // pred_region
          %s260 = ssub.s32 3072, 3072
          %261 = vsyncadd [#allocation6], %s260
          %s262 = sshll.u32 [#allocation5], 4
          %s263 = int_to_ptr.vmem [resolvable:$true] %s262
          %268 = dma.hbm_to_vmem [thread:$0]  %s3, 3072, %s263, [#allocation6], 128, 128, 8
        $region24: #{tpu_custom_call.1} parent=11 // pred_fallthru
          _
        // Predicated region
        $region25: #{tpu_custom_call.1} parent=11 // pred_check
          %p269 = pneg %p136
        $region26: #{tpu_custom_call.1} parent=11 // pred_check_branch
          %271 = sbr.rel (%p269) target = $region28
        $region27: #{tpu_custom_call.1} parent=11 // pred_region
          %s273 = ssub.s32 3072, 3072
          %274 = vsyncadd [#allocation6], %s273
          %s275 = sshll.u32 [#allocation7], 4
          %s276 = int_to_ptr.vmem [resolvable:$true] %s275
          %281 = dma.hbm_to_vmem [thread:$0]  %s4, 3072, %s276, [#allocation6], 128, 128, 8
        $region28: #{tpu_custom_call.1} parent=11 // pred_fallthru
          _
        // Predicated region
        $region29: #{tpu_custom_call.1} parent=11 // pred_check
          %p282 = pneg %p157
        $region30: #{tpu_custom_call.1} parent=11 // pred_check_branch
          %284 = sbr.rel (%p282) target = $region32
        $region31: #{tpu_custom_call.1} parent=11 // pred_region
          %s286 = ssub.s32 3072, 3072
          %287 = vsyncadd [#allocation9], %s286
          %s288 = sshll.u32 [#allocation8], 4
          %s289 = int_to_ptr.vmem [resolvable:$true] %s288
          %294 = dma.hbm_to_vmem [thread:$0]  %s5, 3072, %s289, [#allocation9], 128, 128, 8
        $region32: #{tpu_custom_call.1} parent=11 // pred_fallthru
          _
      $region12: #{tpu_custom_call.1} parent=5 // pred_fallthru
        _
      %p295 = scmp.lt.s32.totalorder %s26, 2
      // Predicated region
      $region33: #{tpu_custom_call.1} parent=5 // pred_check
        %p296 = pneg %p295
      $region34: #{tpu_custom_call.1} parent=5 // pred_check_branch
        %298 = sbr.rel (%p296) target = $region36
      $region35: #{tpu_custom_call.1} parent=5 // pred_region
        // Predicated region
        $region37: #{tpu_custom_call.1} parent=35 // pred_check
          %p299 = pneg %p46
        $region38: #{tpu_custom_call.1} parent=35 // pred_check_branch
          %301 = sbr.rel (%p299) target = $region40
        $region39: #{tpu_custom_call.1} parent=35 // pred_region
          %s302 = sand.u32 %s36, 1
          %s303 = scalar_lea.sflag [#allocation3], %s302
          %s304 = sand.u32 %s36, 1
          %s305 = smul.addr %s304, 64
          %s306 = scalar_lea.vmem [#allocation2], %s305
          %s308 = ssub.s32 1024, 1024
          %309 = vsyncadd %s303, %s308
          %s310 = smul.addr %s26, 8
          %s311 = smul.addr %s310, 128
          %s312 = scalar_lea.hbm %s0, %s311
          %s313 = sshll.u32 %s306, 4
          %s314 = int_to_ptr.vmem [resolvable:$true] %s313
          %319 = dma.hbm_to_vmem [thread:$0]  %s312, 1024, %s314, %s303, 256, 256, 16
        $region40: #{tpu_custom_call.1} parent=35 // pred_fallthru
          _
      $region36: #{tpu_custom_call.1} parent=5 // pred_fallthru
        _
      %p320 = scmp.le.s32.totalorder 1, %s26
      %p321 = scmp.lt.s32.totalorder %s26, 3
      %p322 = pnand %p320, %p321
      %p323 = pneg %p322
      // Predicated region
      $region41: #{tpu_custom_call.1} parent=5 // pred_check
        _
      $region42: #{tpu_custom_call.1} parent=5 // pred_check_branch
        %325 = sbr.rel (%p322) target = $region44
      $region43: #{tpu_custom_call.1} parent=5 // pred_region
        %s326 = ssub.s32 %s26, 1
        %s327 = sand.u32 %s39, 1
        %s328 = scalar_lea.sflag [#allocation3], %s327
        %s329 = sand.u32 %s39, 1
        %s330 = smul.addr %s329, 64
        %s331 = scalar_lea.vmem [#allocation2], %s330
        // Predicated region
        $region45: #{tpu_custom_call.1} parent=43 // pred_check
          %p332 = pneg %p52
        $region46: #{tpu_custom_call.1} parent=43 // pred_check_branch
          %334 = sbr.rel (%p332) target = $region48
        $region47: #{tpu_custom_call.1} parent=43 // pred_region
          %335 = dma.done %s328, 1024
        $region48: #{tpu_custom_call.1} parent=43 // pred_fallthru
          _
        // Predicated region
        $region49: #{tpu_custom_call.1} parent=43 // pred_check
          %p336 = pneg %p115
        $region50: #{tpu_custom_call.1} parent=43 // pred_check_branch
          %338 = sbr.rel (%p336) target = $region52
        $region51: #{tpu_custom_call.1} parent=43 // pred_region
          %339 = dma.done [#allocation6], 3072
        $region52: #{tpu_custom_call.1} parent=43 // pred_fallthru
          _
        // Predicated region
        $region53: #{tpu_custom_call.1} parent=43 // pred_check
          %p340 = pneg %p136
        $region54: #{tpu_custom_call.1} parent=43 // pred_check_branch
          %342 = sbr.rel (%p340) target = $region56
        $region55: #{tpu_custom_call.1} parent=43 // pred_region
          %343 = dma.done [#allocation6], 3072
        $region56: #{tpu_custom_call.1} parent=43 // pred_fallthru
          _
        // Predicated region
        $region57: #{tpu_custom_call.1} parent=43 // pred_check
          %p344 = pneg %p157
        $region58: #{tpu_custom_call.1} parent=43 // pred_check_branch
          %346 = sbr.rel (%p344) target = $region60
        $region59: #{tpu_custom_call.1} parent=43 // pred_region
          %347 = dma.done [#allocation9], 3072
        $region60: #{tpu_custom_call.1} parent=43 // pred_fallthru
          _
        %s348 = sand.u32 %s39, 1
        %s349 = scalar_lea.sflag [#allocation3], %s348
        %s350 = sand.u32 %s39, 1
        %s351 = smul.addr %s350, 64
        %s352 = scalar_lea.vmem [#allocation2], %s351
        %p353 = pneg %p52
        %p354 = pneg %p49
        %p355 = pneg %p73
        %p356 = pneg %p70
        %p357 = pneg %p94
        %p358 = pneg %p91
        %p359 = pneg %p115
        %p360 = pneg %p112
        %p361 = pneg %p136
        %p362 = pneg %p133
        %p363 = pneg %p157
        %p364 = pneg %p154
        %p365 = pneg %p183
        %p366 = pneg %p180
        %s367 = sand.u32 %s170, 1
        %s368 = scalar_lea.sflag [#allocation4], %s367
        %s369 = sand.u32 %s170, 1
        %s370 = smul.addr %s369, 96
        %s371 = scalar_lea.vmem [#allocation10], %s370
        %p372 = pneg %p209
        %p373 = pneg %p206
        %s374 = sand.u32 %s31, 1
        %s375 = scalar_lea.sflag [#allocation12], %s374
        %s376 = sand.u32 %s196, 1
        %s377 = smul.addr %s376, 96
        %s378 = scalar_lea.vmem [#allocation11], %s377
        %p379 = pneg %p235
        %p380 = pneg %p232
        %s381 = sand.u32 %s31, 1
        %s382 = scalar_lea.sflag [#allocation12], %s381
        %s383 = sand.u32 %s222, 1
        %s384 = smul.addr %s383, 96
        %s385 = scalar_lea.vmem [#allocation13], %s384
        %v387 = vld [vmem:[%s331] sm:$0xff]
        %v388 = vld [vmem:[%s331 + $0x8] sm:$0xff]
        %v389 = vld [vmem:[%s331 + $0x10] sm:$0xff]
        %v390 = vld [vmem:[%s331 + $0x18] sm:$0xff]
        %v391 = vld [vmem:[%s331 + $0x20] sm:$0xff]
        %v392 = vld [vmem:[%s331 + $0x28] sm:$0xff]
        %v393 = vld [vmem:[%s331 + $0x30] sm:$0xff]
        %v394 = vld [vmem:[%s331 + $0x38] sm:$0xff]
        %v395 = vld [vmem:[%s1] sm:$0x3]
        %v396 = vld [vmem:[%s2] sm:$0x3]
        %vm397 = vcmask 523264
        %v398 = vsel %vm397, %v388, 0.0
        %v399 = vadd.f32 %v387, %v398
        %400 = vadd.xlane.f32.xlu0 %v399
        %v401 = vpop.xlane.xlu0 %400
        %v402 = vsel %vm397, %v390, 0.0
        %v403 = vadd.f32 %v389, %v402
        %404 = vadd.xlane.f32.xlu0 %v403
        %v405 = vpop.xlane.xlu0 %404
        %v406 = vsel %vm397, %v392, 0.0
        %v407 = vadd.f32 %v391, %v406
        %408 = vadd.xlane.f32.xlu0 %v407
        %v409 = vpop.xlane.xlu0 %408
        %v410 = vsel %vm397, %v394, 0.0
        %v411 = vadd.f32 %v393, %v410
        %412 = vadd.xlane.f32.xlu0 %v411
        %v413 = vpop.xlane.xlu0 %412
        %v414 = vrcp.pop 192.0
        %v415 = vmul.f32 %v401, %v414
        %v416 = vmul.f32 %v405, %v414
        %v417 = vmul.f32 %v409, %v414
        %v418 = vmul.f32 %v413, %v414
        %v419 = vsub.f32 %v387, %v415
        %v420 = vsub.f32 %v388, %v415
        %v421 = vsub.f32 %v389, %v416
        %v422 = vsub.f32 %v390, %v416
        %v423 = vsub.f32 %v391, %v417
        %v424 = vsub.f32 %v392, %v417
        %v425 = vsub.f32 %v393, %v418
        %v426 = vsub.f32 %v394, %v418
        %v427 = vmul.f32 %v419, %v419
        %v428 = vmul.f32 %v420, %v420
        %v429 = vmul.f32 %v421, %v421
        %v430 = vmul.f32 %v422, %v422
        %v431 = vmul.f32 %v423, %v423
        %v432 = vmul.f32 %v424, %v424
        %v433 = vmul.f32 %v425, %v425
        %v434 = vmul.f32 %v426, %v426
        %v435 = vsel %vm397, %v428, 0.0
        %v436 = vadd.f32 %v427, %v435
        %437 = vadd.xlane.f32.xlu0 %v436
        %v438 = vpop.xlane.xlu0 %437
        %v439 = vsel %vm397, %v430, 0.0
        %v440 = vadd.f32 %v429, %v439
        %441 = vadd.xlane.f32.xlu0 %v440
        %v442 = vpop.xlane.xlu0 %441
        %v443 = vsel %vm397, %v432, 0.0
        %v444 = vadd.f32 %v431, %v443
        %445 = vadd.xlane.f32.xlu0 %v444
        %v446 = vpop.xlane.xlu0 %445
        %v447 = vsel %vm397, %v434, 0.0
        %v448 = vadd.f32 %v433, %v447
        %449 = vadd.xlane.f32.xlu0 %v448
        %v450 = vpop.xlane.xlu0 %449
        %v451 = vmul.f32 %v438, %v414
        %v452 = vmul.f32 %v442, %v414
        %v453 = vmul.f32 %v446, %v414
        %v454 = vmul.f32 %v450, %v414
        %v455 = vadd.f32 %v451, 1e-05
        %v456 = vadd.f32 %v452, 1e-05
        %v457 = vadd.f32 %v453, 1e-05
        %v458 = vadd.f32 %v454, 1e-05
        %v459 = vrsqrt.pop %v455
        %v460 = vrsqrt.pop %v456
        %v461 = vrsqrt.pop %v457
        %v462 = vrsqrt.pop %v458
        %v463 = vmul.f32 %v419, %v459
        %v464 = vmul.f32 %v420, %v459
        %v465 = vmul.f32 %v421, %v460
        %v466 = vmul.f32 %v422, %v460
        %v467 = vmul.f32 %v423, %v461
        %v468 = vmul.f32 %v424, %v461
        %v469 = vmul.f32 %v425, %v462
        %v470 = vmul.f32 %v426, %v462
        %v472 = vlaneseq
        %v473 = vshrl.u32 %v472, 7
        %v474 = vsub.s32 0, %v473
        %v475 = vrot.slane %v395, %v474
        %v476 = vlaneseq
        %v477 = vshrl.u32 %v476, 7
        %v478 = vsub.s32 1, %v477
        %v479 = vrot.slane %v395, %v478
        %v482 = vmul.f32 %v463, %v475
        %v483 = vmul.f32 %v464, %v479
        %v484 = vmul.f32 %v465, %v475
        %v485 = vmul.f32 %v466, %v479
        %v486 = vmul.f32 %v467, %v475
        %v487 = vmul.f32 %v468, %v479
        %v488 = vmul.f32 %v469, %v475
        %v489 = vmul.f32 %v470, %v479
        %v491 = vlaneseq
        %v492 = vshrl.u32 %v491, 7
        %v493 = vsub.s32 0, %v492
        %v494 = vrot.slane %v396, %v493
        %v495 = vlaneseq
        %v496 = vshrl.u32 %v495, 7
        %v497 = vsub.s32 1, %v496
        %v498 = vrot.slane %v396, %v497
        %v501 = vadd.f32 %v482, %v494
        %v502 = vadd.f32 %v483, %v498
        %v503 = vadd.f32 %v484, %v494
        %v504 = vadd.f32 %v485, %v498
        %v505 = vadd.f32 %v486, %v494
        %v506 = vadd.f32 %v487, %v498
        %v507 = vadd.f32 %v488, %v494
        %v508 = vadd.f32 %v489, %v498
        %v509 = vpack.c.bf16 %v503, %v501
        %v510 = vpack.c.bf16 %v504, %v502
        %v511 = vpack.c.bf16 %v507, %v505
        %v512 = vpack.c.bf16 %v508, %v506
        %v513 = vld [vmem:[#allocation5] sm:$0xff]
        %v514 = vld [vmem:[#allocation5 + $0x8] sm:$0xff]
        %v515 = vld [vmem:[#allocation5 + $0x10] sm:$0xff]
        %v516 = vld [vmem:[#allocation5 + $0x18] sm:$0xff]
        %v517 = vld [vmem:[#allocation5 + $0x20] sm:$0xff]
        %v518 = vld [vmem:[#allocation5 + $0x28] sm:$0xff]
        %v519 = vld [vmem:[#allocation5 + $0x30] sm:$0xff]
        %v520 = vld [vmem:[#allocation5 + $0x38] sm:$0xff]
        %v521 = vld [vmem:[#allocation5 + $0x40] sm:$0xff]
        %v522 = vld [vmem:[#allocation5 + $0x48] sm:$0xff]
        %v523 = vld [vmem:[#allocation5 + $0x50] sm:$0xff]
        %v524 = vld [vmem:[#allocation5 + $0x58] sm:$0xff]
        %v525 = vld [vmem:[#allocation5 + $0x60] sm:$0xff]
        %v526 = vld [vmem:[#allocation5 + $0x68] sm:$0xff]
        %v527 = vld [vmem:[#allocation5 + $0x70] sm:$0xff]
        %v528 = vld [vmem:[#allocation5 + $0x78] sm:$0xff]
        %v529 = vld [vmem:[#allocation5 + $0x80] sm:$0xff]
        %v530 = vld [vmem:[#allocation5 + $0x88] sm:$0xff]
        %v531 = vld [vmem:[#allocation5 + $0x90] sm:$0xff]
        %v532 = vld [vmem:[#allocation5 + $0x98] sm:$0xff]
        %v533 = vld [vmem:[#allocation5 + $0xa0] sm:$0xff]
        %v534 = vld [vmem:[#allocation5 + $0xa8] sm:$0xff]
        %v535 = vld [vmem:[#allocation5 + $0xb0] sm:$0xff]
        %v536 = vld [vmem:[#allocation5 + $0xb8] sm:$0xff]
        %v561 = vunpack.c.l.b16 %v513
        %v562 = vunpack.c.h.b16 %v513
        %v563 = vunpack.c.l.b16 %v514
        %v564 = vunpack.c.h.b16 %v514
        %v565 = vunpack.c.l.b16 %v515
        %v566 = vunpack.c.h.b16 %v515
        %v567 = vunpack.c.l.b16 %v516
        %v568 = vunpack.c.h.b16 %v516
        %v569 = vunpack.c.l.b16 %v517
        %v570 = vunpack.c.h.b16 %v517
        %v571 = vunpack.c.l.b16 %v518
        %v572 = vunpack.c.h.b16 %v518
        %v573 = vunpack.c.l.b16 %v519
        %v574 = vunpack.c.h.b16 %v519
        %v575 = vunpack.c.l.b16 %v520
        %v576 = vunpack.c.h.b16 %v520
        %v577 = vunpack.c.l.b16 %v521
        %v578 = vunpack.c.h.b16 %v521
        %v579 = vunpack.c.l.b16 %v522
        %v580 = vunpack.c.h.b16 %v522
        %v581 = vunpack.c.l.b16 %v523
        %v582 = vunpack.c.h.b16 %v523
        %v583 = vunpack.c.l.b16 %v524
        %v584 = vunpack.c.h.b16 %v524
        %v585 = vunpack.c.l.b16 %v525
        %v586 = vunpack.c.h.b16 %v525
        %v587 = vunpack.c.l.b16 %v526
        %v588 = vunpack.c.h.b16 %v526
        %v589 = vunpack.c.l.b16 %v527
        %v590 = vunpack.c.h.b16 %v527
        %v591 = vunpack.c.l.b16 %v528
        %v592 = vunpack.c.h.b16 %v528
        %v593 = vunpack.c.l.b16 %v529
        %v594 = vunpack.c.h.b16 %v529
        %v595 = vunpack.c.l.b16 %v530
        %v596 = vunpack.c.h.b16 %v530
        %v597 = vunpack.c.l.b16 %v531
        %v598 = vunpack.c.h.b16 %v531
        %v599 = vunpack.c.l.b16 %v532
        %v600 = vunpack.c.h.b16 %v532
        %v601 = vunpack.c.l.b16 %v533
        %v602 = vunpack.c.h.b16 %v533
        %v603 = vunpack.c.l.b16 %v534
        %v604 = vunpack.c.h.b16 %v534
        %v605 = vunpack.c.l.b16 %v535
        %v606 = vunpack.c.h.b16 %v535
        %v607 = vunpack.c.l.b16 %v536
        %v608 = vunpack.c.h.b16 %v536
        %v609 = vpack.c.b16 %v563, %v561
        %v610 = vpack.c.b16 %v564, %v562
        %v611 = vpack.c.b16 %v567, %v565
        %v612 = vpack.c.b16 %v568, %v566
        %v613 = vpack.c.b16 %v571, %v569
        %v614 = vpack.c.b16 %v572, %v570
        %v615 = vpack.c.b16 %v575, %v573
        %v616 = vpack.c.b16 %v576, %v574
        %v617 = vpack.c.b16 %v579, %v577
        %v618 = vpack.c.b16 %v580, %v578
        %v619 = vpack.c.b16 %v583, %v581
        %v620 = vpack.c.b16 %v584, %v582
        %v621 = vpack.c.b16 %v587, %v585
        %v622 = vpack.c.b16 %v588, %v586
        %v623 = vpack.c.b16 %v591, %v589
        %v624 = vpack.c.b16 %v592, %v590
        %v625 = vpack.c.b16 %v595, %v593
        %v626 = vpack.c.b16 %v596, %v594
        %v627 = vpack.c.b16 %v599, %v597
        %v628 = vpack.c.b16 %v600, %v598
        %v629 = vpack.c.b16 %v603, %v601
        %v630 = vpack.c.b16 %v604, %v602
        %v631 = vpack.c.b16 %v607, %v605
        %v632 = vpack.c.b16 %v608, %v606
        %v658 = vsel %vm397, %v510, 0
        %v661 = vsel %vm397, %v512, 0
        %663 = vmatprep.subr.bf16.mxu0 %v610
        %664 = vmatpush1.bf16.msra.mxu0 %v609
        %665 = vmatprep.subr.bf16.mxu0 %v612
        %666 = vmatpush1.bf16.msra.mxu0 %v611
        %667 = vmatprep.subr.bf16.mxu0 %v614
        %668 = vmatpush1.bf16.msra.mxu0 %v613
        %669 = vmatprep.subr.bf16.mxu0 %v616
        %670 = vmatpush1.bf16.msra.mxu0 %v615
        %671 = vmatprep.subr.bf16.mxu0 %v618
        %672 = vmatpush1.bf16.msra.mxu0 %v617
        %673 = vmatprep.subr.bf16.mxu0 %v620
        %674 = vmatpush1.bf16.msra.mxu0 %v619
        %675 = vmatprep.subr.bf16.mxu0 %v622
        %676 = vmatpush1.bf16.msra.mxu0 %v621
        %677 = vmatprep.subr.bf16.mxu0 %v624
        %678 = vmatpush1.bf16.msra.mxu0 %v623
        %679 = vmatprep.subr.bf16.mxu0 %v626
        %680 = vmatpush1.bf16.msra.mxu0 %v625
        %681 = vmatprep.subr.bf16.mxu0 %v628
        %682 = vmatpush1.bf16.msra.mxu0 %v627
        %683 = vmatprep.subr.bf16.mxu0 %v630
        %684 = vmatpush1.bf16.msra.mxu0 %v629
        %685 = vmatprep.subr.bf16.mxu0 %v632
        %686 = vmatpush1.bf16.msra.mxu0 %v631
        %687 = vmatprep.subr.bf16.mxu0 0
        %688 = vmatpush1.bf16.msra.mxu0 0
        %689 = vmatprep.subr.bf16.mxu0 0
        %690 = vmatpush1.bf16.msra.mxu0 0
        %691 = vmatprep.subr.bf16.mxu0 0
        %692 = vmatpush1.bf16.msra.mxu0 0
        %693 = vmatprep.subr.bf16.mxu0 0
        %694 = vmatpush1.bf16.msra.mxu0 0
        %695 = vmatprep.mubr.bf16.mxu0 %v658
        %696 = vmatmul.mubr.bf16.gmra.mrb[0].mxu0 %v509
        %v697 = vpop.f32.mrb[0].mxu0
        %v698 = vadd.f32 0.0, %v697
        %v699 = vpop.f32.mrb[0].mxu0
        %v700 = vadd.f32 0.0, %v699
        %v701 = vpop.f32.mrb[0].mxu0
        %v702 = vadd.f32 0.0, %v701
        %v703 = vpop.f32.mrb[0].mxu0
        %v704 = vadd.f32 0.0, %v703
        %705 = vmatprep.mubr.bf16.mxu0 %v661
        %706 = vmatmul.mubr.bf16.gmra.mrb[0].mxu0 %v511
        %v707 = vpop.f32.mrb[0].mxu0
        %v708 = vadd.f32 0.0, %v707
        %v709 = vpop.f32.mrb[0].mxu0
        %v710 = vadd.f32 0.0, %v709
        %v711 = vpop.f32.mrb[0].mxu0
        %v712 = vadd.f32 0.0, %v711
        %v713 = vpop.f32.mrb[0].mxu0
        %v714 = vadd.f32 0.0, %v713
        %715 = vdwg.mxu0
        %v716 = vmul.f32 %v698, 0.17677669
        %v717 = vmul.f32 %v700, 0.17677669
        %v718 = vmul.f32 %v702, 0.17677669
        %v719 = vmul.f32 %v704, 0.17677669
        %v720 = vmul.f32 %v708, 0.17677669
        %v721 = vmul.f32 %v710, 0.17677669
        %v722 = vmul.f32 %v712, 0.17677669
        %v723 = vmul.f32 %v714, 0.17677669
        %v724 = vpack.c.bf16 %v718, %v716
        %v725 = vpack.c.bf16 %v719, %v717
        %v726 = vpack.c.bf16 %v722, %v720
        %v727 = vpack.c.bf16 %v723, %v721
        %v728 = vld [vmem:[#allocation7] sm:$0xff]
        %v729 = vld [vmem:[#allocation7 + $0x8] sm:$0xff]
        %v730 = vld [vmem:[#allocation7 + $0x10] sm:$0xff]
        %v731 = vld [vmem:[#allocation7 + $0x18] sm:$0xff]
        %v732 = vld [vmem:[#allocation7 + $0x20] sm:$0xff]
        %v733 = vld [vmem:[#allocation7 + $0x28] sm:$0xff]
        %v734 = vld [vmem:[#allocation7 + $0x30] sm:$0xff]
        %v735 = vld [vmem:[#allocation7 + $0x38] sm:$0xff]
        %v736 = vld [vmem:[#allocation7 + $0x40] sm:$0xff]
        %v737 = vld [vmem:[#allocation7 + $0x48] sm:$0xff]
        %v738 = vld [vmem:[#allocation7 + $0x50] sm:$0xff]
        %v739 = vld [vmem:[#allocation7 + $0x58] sm:$0xff]
        %v740 = vld [vmem:[#allocation7 + $0x60] sm:$0xff]
        %v741 = vld [vmem:[#allocation7 + $0x68] sm:$0xff]
        %v742 = vld [vmem:[#allocation7 + $0x70] sm:$0xff]
        %v743 = vld [vmem:[#allocation7 + $0x78] sm:$0xff]
        %v744 = vld [vmem:[#allocation7 + $0x80] sm:$0xff]
        %v745 = vld [vmem:[#allocation7 + $0x88] sm:$0xff]
        %v746 = vld [vmem:[#allocation7 + $0x90] sm:$0xff]
        %v747 = vld [vmem:[#allocation7 + $0x98] sm:$0xff]
        %v748 = vld [vmem:[#allocation7 + $0xa0] sm:$0xff]
        %v749 = vld [vmem:[#allocation7 + $0xa8] sm:$0xff]
        %v750 = vld [vmem:[#allocation7 + $0xb0] sm:$0xff]
        %v751 = vld [vmem:[#allocation7 + $0xb8] sm:$0xff]
        %v776 = vunpack.c.l.b16 %v728
        %v777 = vunpack.c.h.b16 %v728
        %v778 = vunpack.c.l.b16 %v729
        %v779 = vunpack.c.h.b16 %v729
        %v780 = vunpack.c.l.b16 %v730
        %v781 = vunpack.c.h.b16 %v730
        %v782 = vunpack.c.l.b16 %v731
        %v783 = vunpack.c.h.b16 %v731
        %v784 = vunpack.c.l.b16 %v732
        %v785 = vunpack.c.h.b16 %v732
        %v786 = vunpack.c.l.b16 %v733
        %v787 = vunpack.c.h.b16 %v733
        %v788 = vunpack.c.l.b16 %v734
        %v789 = vunpack.c.h.b16 %v734
        %v790 = vunpack.c.l.b16 %v735
        %v791 = vunpack.c.h.b16 %v735
        %v792 = vunpack.c.l.b16 %v736
        %v793 = vunpack.c.h.b16 %v736
        %v794 = vunpack.c.l.b16 %v737
        %v795 = vunpack.c.h.b16 %v737
        %v796 = vunpack.c.l.b16 %v738
        %v797 = vunpack.c.h.b16 %v738
        %v798 = vunpack.c.l.b16 %v739
        %v799 = vunpack.c.h.b16 %v739
        %v800 = vunpack.c.l.b16 %v740
        %v801 = vunpack.c.h.b16 %v740
        %v802 = vunpack.c.l.b16 %v741
        %v803 = vunpack.c.h.b16 %v741
        %v804 = vunpack.c.l.b16 %v742
        %v805 = vunpack.c.h.b16 %v742
        %v806 = vunpack.c.l.b16 %v743
        %v807 = vunpack.c.h.b16 %v743
        %v808 = vunpack.c.l.b16 %v744
        %v809 = vunpack.c.h.b16 %v744
        %v810 = vunpack.c.l.b16 %v745
        %v811 = vunpack.c.h.b16 %v745
        %v812 = vunpack.c.l.b16 %v746
        %v813 = vunpack.c.h.b16 %v746
        %v814 = vunpack.c.l.b16 %v747
        %v815 = vunpack.c.h.b16 %v747
        %v816 = vunpack.c.l.b16 %v748
        %v817 = vunpack.c.h.b16 %v748
        %v818 = vunpack.c.l.b16 %v749
        %v819 = vunpack.c.h.b16 %v749
        %v820 = vunpack.c.l.b16 %v750
        %v821 = vunpack.c.h.b16 %v750
        %v822 = vunpack.c.l.b16 %v751
        %v823 = vunpack.c.h.b16 %v751
        %v824 = vpack.c.b16 %v778, %v776
        %v825 = vpack.c.b16 %v779, %v777
        %v826 = vpack.c.b16 %v782, %v780
        %v827 = vpack.c.b16 %v783, %v781
        %v828 = vpack.c.b16 %v786, %v784
        %v829 = vpack.c.b16 %v787, %v785
        %v830 = vpack.c.b16 %v790, %v788
        %v831 = vpack.c.b16 %v791, %v789
        %v832 = vpack.c.b16 %v794, %v792
        %v833 = vpack.c.b16 %v795, %v793
        %v834 = vpack.c.b16 %v798, %v796
        %v835 = vpack.c.b16 %v799, %v797
        %v836 = vpack.c.b16 %v802, %v800
        %v837 = vpack.c.b16 %v803, %v801
        %v838 = vpack.c.b16 %v806, %v804
        %v839 = vpack.c.b16 %v807, %v805
        %v840 = vpack.c.b16 %v810, %v808
        %v841 = vpack.c.b16 %v811, %v809
        %v842 = vpack.c.b16 %v814, %v812
        %v843 = vpack.c.b16 %v815, %v813
        %v844 = vpack.c.b16 %v818, %v816
        %v845 = vpack.c.b16 %v819, %v817
        %v846 = vpack.c.b16 %v822, %v820
        %v847 = vpack.c.b16 %v823, %v821
        %872 = vmatprep.subr.bf16.mxu0 %v825
        %873 = vmatpush1.bf16.msra.mxu0 %v824
        %874 = vmatprep.subr.bf16.mxu0 %v827
        %875 = vmatpush1.bf16.msra.mxu0 %v826
        %876 = vmatprep.subr.bf16.mxu0 %v829
        %877 = vmatpush1.bf16.msra.mxu0 %v828
        %878 = vmatprep.subr.bf16.mxu0 %v831
        %879 = vmatpush1.bf16.msra.mxu0 %v830
        %880 = vmatprep.subr.bf16.mxu0 %v833
        %881 = vmatpush1.bf16.msra.mxu0 %v832
        %882 = vmatprep.subr.bf16.mxu0 %v835
        %883 = vmatpush1.bf16.msra.mxu0 %v834
        %884 = vmatprep.subr.bf16.mxu0 %v837
        %885 = vmatpush1.bf16.msra.mxu0 %v836
        %886 = vmatprep.subr.bf16.mxu0 %v839
        %887 = vmatpush1.bf16.msra.mxu0 %v838
        %888 = vmatprep.subr.bf16.mxu0 %v841
        %889 = vmatpush1.bf16.msra.mxu0 %v840
        %890 = vmatprep.subr.bf16.mxu0 %v843
        %891 = vmatpush1.bf16.msra.mxu0 %v842
        %892 = vmatprep.subr.bf16.mxu0 %v845
        %893 = vmatpush1.bf16.msra.mxu0 %v844
        %894 = vmatprep.subr.bf16.mxu0 %v847
        %895 = vmatpush1.bf16.msra.mxu0 %v846
        %896 = vmatprep.subr.bf16.mxu0 0
        %897 = vmatpush1.bf16.msra.mxu0 0
        %898 = vmatprep.subr.bf16.mxu0 0
        %899 = vmatpush1.bf16.msra.mxu0 0
        %900 = vmatprep.subr.bf16.mxu0 0
        %901 = vmatpush1.bf16.msra.mxu0 0
        %902 = vmatprep.subr.bf16.mxu0 0
        %903 = vmatpush1.bf16.msra.mxu0 0
        %904 = vmatprep.mubr.bf16.mxu0 %v658
        %905 = vmatmul.mubr.bf16.gmra.mrb[0].mxu0 %v509
        %v906 = vpop.f32.mrb[0].mxu0
        %v907 = vadd.f32 0.0, %v906
        %v908 = vpop.f32.mrb[0].mxu0
        %v909 = vadd.f32 0.0, %v908
        %v910 = vpop.f32.mrb[0].mxu0
        %v911 = vadd.f32 0.0, %v910
        %v912 = vpop.f32.mrb[0].mxu0
        %v913 = vadd.f32 0.0, %v912
        %914 = vmatprep.mubr.bf16.mxu0 %v661
        %915 = vmatmul.mubr.bf16.gmra.mrb[0].mxu0 %v511
        %v916 = vpop.f32.mrb[0].mxu0
        %v917 = vadd.f32 0.0, %v916
        %v918 = vpop.f32.mrb[0].mxu0
        %v919 = vadd.f32 0.0, %v918
        %v920 = vpop.f32.mrb[0].mxu0
        %v921 = vadd.f32 0.0, %v920
        %v922 = vpop.f32.mrb[0].mxu0
        %v923 = vadd.f32 0.0, %v922
        %924 = vdwg.mxu0
        %v925 = vpack.c.bf16 %v911, %v907
        %v926 = vpack.c.bf16 %v913, %v909
        %v927 = vpack.c.bf16 %v921, %v917
        %v928 = vpack.c.bf16 %v923, %v919
        %v929 = vld [vmem:[#allocation8] sm:$0xff]
        %v930 = vld [vmem:[#allocation8 + $0x8] sm:$0xff]
        %v931 = vld [vmem:[#allocation8 + $0x10] sm:$0xff]
        %v932 = vld [vmem:[#allocation8 + $0x18] sm:$0xff]
        %v933 = vld [vmem:[#allocation8 + $0x20] sm:$0xff]
        %v934 = vld [vmem:[#allocation8 + $0x28] sm:$0xff]
        %v935 = vld [vmem:[#allocation8 + $0x30] sm:$0xff]
        %v936 = vld [vmem:[#allocation8 + $0x38] sm:$0xff]
        %v937 = vld [vmem:[#allocation8 + $0x40] sm:$0xff]
        %v938 = vld [vmem:[#allocation8 + $0x48] sm:$0xff]
        %v939 = vld [vmem:[#allocation8 + $0x50] sm:$0xff]
        %v940 = vld [vmem:[#allocation8 + $0x58] sm:$0xff]
        %v941 = vld [vmem:[#allocation8 + $0x60] sm:$0xff]
        %v942 = vld [vmem:[#allocation8 + $0x68] sm:$0xff]
        %v943 = vld [vmem:[#allocation8 + $0x70] sm:$0xff]
        %v944 = vld [vmem:[#allocation8 + $0x78] sm:$0xff]
        %v945 = vld [vmem:[#allocation8 + $0x80] sm:$0xff]
        %v946 = vld [vmem:[#allocation8 + $0x88] sm:$0xff]
        %v947 = vld [vmem:[#allocation8 + $0x90] sm:$0xff]
        %v948 = vld [vmem:[#allocation8 + $0x98] sm:$0xff]
        %v949 = vld [vmem:[#allocation8 + $0xa0] sm:$0xff]
        %v950 = vld [vmem:[#allocation8 + $0xa8] sm:$0xff]
        %v951 = vld [vmem:[#allocation8 + $0xb0] sm:$0xff]
        %v952 = vld [vmem:[#allocation8 + $0xb8] sm:$0xff]
        %v977 = vunpack.c.l.b16 %v929
        %v978 = vunpack.c.h.b16 %v929
        %v979 = vunpack.c.l.b16 %v930
        %v980 = vunpack.c.h.b16 %v930
        %v981 = vunpack.c.l.b16 %v931
        %v982 = vunpack.c.h.b16 %v931
        %v983 = vunpack.c.l.b16 %v932
        %v984 = vunpack.c.h.b16 %v932
        %v985 = vunpack.c.l.b16 %v933
        %v986 = vunpack.c.h.b16 %v933
        %v987 = vunpack.c.l.b16 %v934
        %v988 = vunpack.c.h.b16 %v934
        %v989 = vunpack.c.l.b16 %v935
        %v990 = vunpack.c.h.b16 %v935
        %v991 = vunpack.c.l.b16 %v936
        %v992 = vunpack.c.h.b16 %v936
        %v993 = vunpack.c.l.b16 %v937
        %v994 = vunpack.c.h.b16 %v937
        %v995 = vunpack.c.l.b16 %v938
        %v996 = vunpack.c.h.b16 %v938
        %v997 = vunpack.c.l.b16 %v939
        %v998 = vunpack.c.h.b16 %v939
        %v999 = vunpack.c.l.b16 %v940
        %v1000 = vunpack.c.h.b16 %v940
        %v1001 = vunpack.c.l.b16 %v941
        %v1002 = vunpack.c.h.b16 %v941
        %v1003 = vunpack.c.l.b16 %v942
        %v1004 = vunpack.c.h.b16 %v942
        %v1005 = vunpack.c.l.b16 %v943
        %v1006 = vunpack.c.h.b16 %v943
        %v1007 = vunpack.c.l.b16 %v944
        %v1008 = vunpack.c.h.b16 %v944
        %v1009 = vunpack.c.l.b16 %v945
        %v1010 = vunpack.c.h.b16 %v945
        %v1011 = vunpack.c.l.b16 %v946
        %v1012 = vunpack.c.h.b16 %v946
        %v1013 = vunpack.c.l.b16 %v947
        %v1014 = vunpack.c.h.b16 %v947
        %v1015 = vunpack.c.l.b16 %v948
        %v1016 = vunpack.c.h.b16 %v948
        %v1017 = vunpack.c.l.b16 %v949
        %v1018 = vunpack.c.h.b16 %v949
        %v1019 = vunpack.c.l.b16 %v950
        %v1020 = vunpack.c.h.b16 %v950
        %v1021 = vunpack.c.l.b16 %v951
        %v1022 = vunpack.c.h.b16 %v951
        %v1023 = vunpack.c.l.b16 %v952
        %v1024 = vunpack.c.h.b16 %v952
        %v1025 = vpack.c.b16 %v979, %v977
        %v1026 = vpack.c.b16 %v980, %v978
        %v1027 = vpack.c.b16 %v983, %v981
        %v1028 = vpack.c.b16 %v984, %v982
        %v1029 = vpack.c.b16 %v987, %v985
        %v1030 = vpack.c.b16 %v988, %v986
        %v1031 = vpack.c.b16 %v991, %v989
        %v1032 = vpack.c.b16 %v992, %v990
        %v1033 = vpack.c.b16 %v995, %v993
        %v1034 = vpack.c.b16 %v996, %v994
        %v1035 = vpack.c.b16 %v999, %v997
        %v1036 = vpack.c.b16 %v1000, %v998
        %v1037 = vpack.c.b16 %v1003, %v1001
        %v1038 = vpack.c.b16 %v1004, %v1002
        %v1039 = vpack.c.b16 %v1007, %v1005
        %v1040 = vpack.c.b16 %v1008, %v1006
        %v1041 = vpack.c.b16 %v1011, %v1009
        %v1042 = vpack.c.b16 %v1012, %v1010
        %v1043 = vpack.c.b16 %v1015, %v1013
        %v1044 = vpack.c.b16 %v1016, %v1014
        %v1045 = vpack.c.b16 %v1019, %v1017
        %v1046 = vpack.c.b16 %v1020, %v1018
        %v1047 = vpack.c.b16 %v1023, %v1021
        %v1048 = vpack.c.b16 %v1024, %v1022
        %1073 = vmatprep.subr.bf16.mxu0 %v1026
        %1074 = vmatpush1.bf16.msra.mxu0 %v1025
        %1075 = vmatprep.subr.bf16.mxu0 %v1028
        %1076 = vmatpush1.bf16.msra.mxu0 %v1027
        %1077 = vmatprep.subr.bf16.mxu0 %v1030
        %1078 = vmatpush1.bf16.msra.mxu0 %v1029
        %1079 = vmatprep.subr.bf16.mxu0 %v1032
        %1080 = vmatpush1.bf16.msra.mxu0 %v1031
        %1081 = vmatprep.subr.bf16.mxu0 %v1034
        %1082 = vmatpush1.bf16.msra.mxu0 %v1033
        %1083 = vmatprep.subr.bf16.mxu0 %v1036
        %1084 = vmatpush1.bf16.msra.mxu0 %v1035
        %1085 = vmatprep.subr.bf16.mxu0 %v1038
        %1086 = vmatpush1.bf16.msra.mxu0 %v1037
        %1087 = vmatprep.subr.bf16.mxu0 %v1040
        %1088 = vmatpush1.bf16.msra.mxu0 %v1039
        %1089 = vmatprep.subr.bf16.mxu0 %v1042
        %1090 = vmatpush1.bf16.msra.mxu0 %v1041
        %1091 = vmatprep.subr.bf16.mxu0 %v1044
        %1092 = vmatpush1.bf16.msra.mxu0 %v1043
        %1093 = vmatprep.subr.bf16.mxu0 %v1046
        %1094 = vmatpush1.bf16.msra.mxu0 %v1045
        %1095 = vmatprep.subr.bf16.mxu0 %v1048
        %1096 = vmatpush1.bf16.msra.mxu0 %v1047
        %1097 = vmatprep.subr.bf16.mxu0 0
        %1098 = vmatpush1.bf16.msra.mxu0 0
        %1099 = vmatprep.subr.bf16.mxu0 0
        %1100 = vmatpush1.bf16.msra.mxu0 0
        %1101 = vmatprep.subr.bf16.mxu0 0
        %1102 = vmatpush1.bf16.msra.mxu0 0
        %1103 = vmatprep.subr.bf16.mxu0 0
        %1104 = vmatpush1.bf16.msra.mxu0 0
        %1105 = vmatprep.mubr.bf16.mxu0 %v658
        %1106 = vmatmul.mubr.bf16.gmra.mrb[0].mxu0 %v509
        %v1107 = vpop.f32.mrb[0].mxu0
        %v1108 = vadd.f32 0.0, %v1107
        %v1109 = vpop.f32.mrb[0].mxu0
        %v1110 = vadd.f32 0.0, %v1109
        %v1111 = vpop.f32.mrb[0].mxu0
        %v1112 = vadd.f32 0.0, %v1111
        %v1113 = vpop.f32.mrb[0].mxu0
        %v1114 = vadd.f32 0.0, %v1113
        %1115 = vmatprep.mubr.bf16.mxu0 %v661
        %1116 = vmatmul.mubr.bf16.gmra.mrb[0].mxu0 %v511
        %v1117 = vpop.f32.mrb[0].mxu0
        %v1118 = vadd.f32 0.0, %v1117
        %v1119 = vpop.f32.mrb[0].mxu0
        %v1120 = vadd.f32 0.0, %v1119
        %v1121 = vpop.f32.mrb[0].mxu0
        %v1122 = vadd.f32 0.0, %v1121
        %v1123 = vpop.f32.mrb[0].mxu0
        %v1124 = vadd.f32 0.0, %v1123
        %1125 = vdwg.mxu0
        %v1126 = vpack.c.bf16 %v1112, %v1108
        %v1127 = vpack.c.bf16 %v1114, %v1110
        %v1128 = vpack.c.bf16 %v1122, %v1118
        %v1129 = vpack.c.bf16 %v1124, %v1120
        %v1132 = vunpack.c.l.b16 %v724
        %v1133 = vunpack.c.h.b16 %v724
        %v1134 = vunpack.c.l.b16 %v726
        %v1135 = vunpack.c.h.b16 %v726
        %v1136 = vpack.c.b16 %v1132, %v1132
        %v1137 = vpack.c.b16 %v1133, %v1133
        %v1138 = vpack.c.b16 %v1134, %v1134
        %v1139 = vpack.c.b16 %v1135, %v1135
        %vm1144 = vcmask 257024
        %1145 = vst.msk [vmem:[%s371] sm:$0xf] %vm1144, %v1136
        %1146 = vst.msk [vmem:[%s371 + $0x4] sm:$0xf] %vm1144, %v1137
        %1147 = vst.msk [vmem:[%s371 + $0x8] sm:$0xf] %vm1144, %v1138
        %1148 = vst.msk [vmem:[%s371 + $0xc] sm:$0xf] %vm1144, %v1139
        %v1151 = vunpack.c.l.b16 %v925
        %v1152 = vunpack.c.h.b16 %v925
        %v1153 = vunpack.c.l.b16 %v927
        %v1154 = vunpack.c.h.b16 %v927
        %v1155 = vpack.c.b16 %v1151, %v1151
        %v1156 = vpack.c.b16 %v1152, %v1152
        %v1157 = vpack.c.b16 %v1153, %v1153
        %v1158 = vpack.c.b16 %v1154, %v1154
        %1163 = vst.msk [vmem:[%s378] sm:$0xf] %vm1144, %v1155
        %1164 = vst.msk [vmem:[%s378 + $0x4] sm:$0xf] %vm1144, %v1156
        %1165 = vst.msk [vmem:[%s378 + $0x8] sm:$0xf] %vm1144, %v1157
        %1166 = vst.msk [vmem:[%s378 + $0xc] sm:$0xf] %vm1144, %v1158
        %v1169 = vunpack.c.l.b16 %v1126
        %v1170 = vunpack.c.h.b16 %v1126
        %v1171 = vunpack.c.l.b16 %v1128
        %v1172 = vunpack.c.h.b16 %v1128
        %v1173 = vpack.c.b16 %v1169, %v1169
        %v1174 = vpack.c.b16 %v1170, %v1170
        %v1175 = vpack.c.b16 %v1171, %v1171
        %v1176 = vpack.c.b16 %v1172, %v1172
        %1181 = vst.msk [vmem:[%s385] sm:$0xf] %vm1144, %v1173
        %1182 = vst.msk [vmem:[%s385 + $0x4] sm:$0xf] %vm1144, %v1174
        %1183 = vst.msk [vmem:[%s385 + $0x8] sm:$0xf] %vm1144, %v1175
        %1184 = vst.msk [vmem:[%s385 + $0xc] sm:$0xf] %vm1144, %v1176
        %1185 = vrot.lane.b32.xlu0 %v1136, 96
        %v1186 = vpop.permute.xlu0 %1185
        %1187 = vrot.lane.b32.xlu0 %v1137, 96
        %v1188 = vpop.permute.xlu0 %1187
        %1189 = vrot.lane.b32.xlu0 %v1138, 96
        %v1190 = vpop.permute.xlu0 %1189
        %1191 = vrot.lane.b32.xlu0 %v1139, 96
        %v1192 = vpop.permute.xlu0 %1191
        %s1197 = scalar_lea.vmem %s371, 16 [#allocation10]
        %1198 = vst.msk [vmem:[%s1197] sm:$0xf] %vm1144, %v1186
        %1199 = vst.msk [vmem:[%s1197 + $0x4] sm:$0xf] %vm1144, %v1188
        %1200 = vst.msk [vmem:[%s1197 + $0x8] sm:$0xf] %vm1144, %v1190
        %1201 = vst.msk [vmem:[%s1197 + $0xc] sm:$0xf] %vm1144, %v1192
        %1202 = vrot.lane.b32.xlu0 %v1155, 96
        %v1203 = vpop.permute.xlu0 %1202
        %1204 = vrot.lane.b32.xlu0 %v1156, 96
        %v1205 = vpop.permute.xlu0 %1204
        %1206 = vrot.lane.b32.xlu0 %v1157, 96
        %v1207 = vpop.permute.xlu0 %1206
        %1208 = vrot.lane.b32.xlu0 %v1158, 96
        %v1209 = vpop.permute.xlu0 %1208
        %s1214 = scalar_lea.vmem %s378, 16 [#allocation11]
        %1215 = vst.msk [vmem:[%s1214] sm:$0xf] %vm1144, %v1203
        %1216 = vst.msk [vmem:[%s1214 + $0x4] sm:$0xf] %vm1144, %v1205
        %1217 = vst.msk [vmem:[%s1214 + $0x8] sm:$0xf] %vm1144, %v1207
        %1218 = vst.msk [vmem:[%s1214 + $0xc] sm:$0xf] %vm1144, %v1209
        %1219 = vrot.lane.b32.xlu0 %v1173, 96
        %v1220 = vpop.permute.xlu0 %1219
        %1221 = vrot.lane.b32.xlu0 %v1174, 96
        %v1222 = vpop.permute.xlu0 %1221
        %1223 = vrot.lane.b32.xlu0 %v1175, 96
        %v1224 = vpop.permute.xlu0 %1223
        %1225 = vrot.lane.b32.xlu0 %v1176, 96
        %v1226 = vpop.permute.xlu0 %1225
        %s1231 = scalar_lea.vmem %s385, 16 [#allocation13]
        %1232 = vst.msk [vmem:[%s1231] sm:$0xf] %vm1144, %v1220
        %1233 = vst.msk [vmem:[%s1231 + $0x4] sm:$0xf] %vm1144, %v1222
        %1234 = vst.msk [vmem:[%s1231 + $0x8] sm:$0xf] %vm1144, %v1224
        %1235 = vst.msk [vmem:[%s1231 + $0xc] sm:$0xf] %vm1144, %v1226
        %1236 = vrot.lane.b32.xlu0 %v1136, 64
        %v1237 = vpop.permute.xlu0 %1236
        %1238 = vrot.lane.b32.xlu0 %v1137, 64
        %v1239 = vpop.permute.xlu0 %1238
        %1240 = vrot.lane.b32.xlu0 %v1138, 64
        %v1241 = vpop.permute.xlu0 %1240
        %1242 = vrot.lane.b32.xlu0 %v1139, 64
        %v1243 = vpop.permute.xlu0 %1242
        %s1248 = scalar_lea.vmem %s371, 32 [#allocation10]
        %1249 = vst.msk [vmem:[%s1248] sm:$0xf] %vm1144, %v1237
        %1250 = vst.msk [vmem:[%s1248 + $0x4] sm:$0xf] %vm1144, %v1239
        %1251 = vst.msk [vmem:[%s1248 + $0x8] sm:$0xf] %vm1144, %v1241
        %1252 = vst.msk [vmem:[%s1248 + $0xc] sm:$0xf] %vm1144, %v1243
        %1253 = vrot.lane.b32.xlu0 %v1155, 64
        %v1254 = vpop.permute.xlu0 %1253
        %1255 = vrot.lane.b32.xlu0 %v1156, 64
        %v1256 = vpop.permute.xlu0 %1255
        %1257 = vrot.lane.b32.xlu0 %v1157, 64
        %v1258 = vpop.permute.xlu0 %1257
        %1259 = vrot.lane.b32.xlu0 %v1158, 64
        %v1260 = vpop.permute.xlu0 %1259
        %s1265 = scalar_lea.vmem %s378, 32 [#allocation11]
        %1266 = vst.msk [vmem:[%s1265] sm:$0xf] %vm1144, %v1254
        %1267 = vst.msk [vmem:[%s1265 + $0x4] sm:$0xf] %vm1144, %v1256
        %1268 = vst.msk [vmem:[%s1265 + $0x8] sm:$0xf] %vm1144, %v1258
        %1269 = vst.msk [vmem:[%s1265 + $0xc] sm:$0xf] %vm1144, %v1260
        %1270 = vrot.lane.b32.xlu0 %v1173, 64
        %v1271 = vpop.permute.xlu0 %1270
        %1272 = vrot.lane.b32.xlu0 %v1174, 64
        %v1273 = vpop.permute.xlu0 %1272
        %1274 = vrot.lane.b32.xlu0 %v1175, 64
        %v1275 = vpop.permute.xlu0 %1274
        %1276 = vrot.lane.b32.xlu0 %v1176, 64
        %v1277 = vpop.permute.xlu0 %1276
        %s1282 = scalar_lea.vmem %s385, 32 [#allocation13]
        %1283 = vst.msk [vmem:[%s1282] sm:$0xf] %vm1144, %v1271
        %1284 = vst.msk [vmem:[%s1282 + $0x4] sm:$0xf] %vm1144, %v1273
        %1285 = vst.msk [vmem:[%s1282 + $0x8] sm:$0xf] %vm1144, %v1275
        %1286 = vst.msk [vmem:[%s1282 + $0xc] sm:$0xf] %vm1144, %v1277
        %1287 = vrot.lane.b32.xlu0 %v1136, 32
        %v1288 = vpop.permute.xlu0 %1287
        %1289 = vrot.lane.b32.xlu0 %v1137, 32
        %v1290 = vpop.permute.xlu0 %1289
        %1291 = vrot.lane.b32.xlu0 %v1138, 32
        %v1292 = vpop.permute.xlu0 %1291
        %1293 = vrot.lane.b32.xlu0 %v1139, 32
        %v1294 = vpop.permute.xlu0 %1293
        %s1299 = scalar_lea.vmem %s371, 48 [#allocation10]
        %1300 = vst.msk [vmem:[%s1299] sm:$0xf] %vm1144, %v1288
        %1301 = vst.msk [vmem:[%s1299 + $0x4] sm:$0xf] %vm1144, %v1290
        %1302 = vst.msk [vmem:[%s1299 + $0x8] sm:$0xf] %vm1144, %v1292
        %1303 = vst.msk [vmem:[%s1299 + $0xc] sm:$0xf] %vm1144, %v1294
        %1304 = vrot.lane.b32.xlu0 %v1155, 32
        %v1305 = vpop.permute.xlu0 %1304
        %1306 = vrot.lane.b32.xlu0 %v1156, 32
        %v1307 = vpop.permute.xlu0 %1306
        %1308 = vrot.lane.b32.xlu0 %v1157, 32
        %v1309 = vpop.permute.xlu0 %1308
        %1310 = vrot.lane.b32.xlu0 %v1158, 32
        %v1311 = vpop.permute.xlu0 %1310
        %s1316 = scalar_lea.vmem %s378, 48 [#allocation11]
        %1317 = vst.msk [vmem:[%s1316] sm:$0xf] %vm1144, %v1305
        %1318 = vst.msk [vmem:[%s1316 + $0x4] sm:$0xf] %vm1144, %v1307
        %1319 = vst.msk [vmem:[%s1316 + $0x8] sm:$0xf] %vm1144, %v1309
        %1320 = vst.msk [vmem:[%s1316 + $0xc] sm:$0xf] %vm1144, %v1311
        %1321 = vrot.lane.b32.xlu0 %v1173, 32
        %v1322 = vpop.permute.xlu0 %1321
        %1323 = vrot.lane.b32.xlu0 %v1174, 32
        %v1324 = vpop.permute.xlu0 %1323
        %1325 = vrot.lane.b32.xlu0 %v1175, 32
        %v1326 = vpop.permute.xlu0 %1325
        %1327 = vrot.lane.b32.xlu0 %v1176, 32
        %v1328 = vpop.permute.xlu0 %1327
        %s1333 = scalar_lea.vmem %s385, 48 [#allocation13]
        %1334 = vst.msk [vmem:[%s1333] sm:$0xf] %vm1144, %v1322
        %1335 = vst.msk [vmem:[%s1333 + $0x4] sm:$0xf] %vm1144, %v1324
        %1336 = vst.msk [vmem:[%s1333 + $0x8] sm:$0xf] %vm1144, %v1326
        %1337 = vst.msk [vmem:[%s1333 + $0xc] sm:$0xf] %vm1144, %v1328
        %v1340 = vunpack.c.l.b16 %v725
        %v1341 = vunpack.c.h.b16 %v725
        %v1342 = vunpack.c.l.b16 %v727
        %v1343 = vunpack.c.h.b16 %v727
        %v1344 = vpack.c.b16 %v1340, %v1340
        %v1345 = vpack.c.b16 %v1341, %v1341
        %v1346 = vpack.c.b16 %v1342, %v1342
        %v1347 = vpack.c.b16 %v1343, %v1343
        %s1352 = scalar_lea.vmem %s371, 64 [#allocation10]
        %1353 = vst.msk [vmem:[%s1352] sm:$0xf] %vm1144, %v1344
        %1354 = vst.msk [vmem:[%s1352 + $0x4] sm:$0xf] %vm1144, %v1345
        %1355 = vst.msk [vmem:[%s1352 + $0x8] sm:$0xf] %vm1144, %v1346
        %1356 = vst.msk [vmem:[%s1352 + $0xc] sm:$0xf] %vm1144, %v1347
        %v1359 = vunpack.c.l.b16 %v926
        %v1360 = vunpack.c.h.b16 %v926
        %v1361 = vunpack.c.l.b16 %v928
        %v1362 = vunpack.c.h.b16 %v928
        %v1363 = vpack.c.b16 %v1359, %v1359
        %v1364 = vpack.c.b16 %v1360, %v1360
        %v1365 = vpack.c.b16 %v1361, %v1361
        %v1366 = vpack.c.b16 %v1362, %v1362
        %s1371 = scalar_lea.vmem %s378, 64 [#allocation11]
        %1372 = vst.msk [vmem:[%s1371] sm:$0xf] %vm1144, %v1363
        %1373 = vst.msk [vmem:[%s1371 + $0x4] sm:$0xf] %vm1144, %v1364
        %1374 = vst.msk [vmem:[%s1371 + $0x8] sm:$0xf] %vm1144, %v1365
        %1375 = vst.msk [vmem:[%s1371 + $0xc] sm:$0xf] %vm1144, %v1366
        %v1378 = vunpack.c.l.b16 %v1127
        %v1379 = vunpack.c.h.b16 %v1127
        %v1380 = vunpack.c.l.b16 %v1129
        %v1381 = vunpack.c.h.b16 %v1129
        %v1382 = vpack.c.b16 %v1378, %v1378
        %v1383 = vpack.c.b16 %v1379, %v1379
        %v1384 = vpack.c.b16 %v1380, %v1380
        %v1385 = vpack.c.b16 %v1381, %v1381
        %s1390 = scalar_lea.vmem %s385, 64 [#allocation13]
        %1391 = vst.msk [vmem:[%s1390] sm:$0xf] %vm1144, %v1382
        %1392 = vst.msk [vmem:[%s1390 + $0x4] sm:$0xf] %vm1144, %v1383
        %1393 = vst.msk [vmem:[%s1390 + $0x8] sm:$0xf] %vm1144, %v1384
        %1394 = vst.msk [vmem:[%s1390 + $0xc] sm:$0xf] %vm1144, %v1385
        %1395 = vrot.lane.b32.xlu0 %v1344, 96
        %v1396 = vpop.permute.xlu0 %1395
        %1397 = vrot.lane.b32.xlu0 %v1345, 96
        %v1398 = vpop.permute.xlu0 %1397
        %1399 = vrot.lane.b32.xlu0 %v1346, 96
        %v1400 = vpop.permute.xlu0 %1399
        %1401 = vrot.lane.b32.xlu0 %v1347, 96
        %v1402 = vpop.permute.xlu0 %1401
        %s1407 = scalar_lea.vmem %s371, 80 [#allocation10]
        %1408 = vst.msk [vmem:[%s1407] sm:$0xf] %vm1144, %v1396
        %1409 = vst.msk [vmem:[%s1407 + $0x4] sm:$0xf] %vm1144, %v1398
        %1410 = vst.msk [vmem:[%s1407 + $0x8] sm:$0xf] %vm1144, %v1400
        %1411 = vst.msk [vmem:[%s1407 + $0xc] sm:$0xf] %vm1144, %v1402
        %1412 = vrot.lane.b32.xlu0 %v1363, 96
        %v1413 = vpop.permute.xlu0 %1412
        %1414 = vrot.lane.b32.xlu0 %v1364, 96
        %v1415 = vpop.permute.xlu0 %1414
        %1416 = vrot.lane.b32.xlu0 %v1365, 96
        %v1417 = vpop.permute.xlu0 %1416
        %1418 = vrot.lane.b32.xlu0 %v1366, 96
        %v1419 = vpop.permute.xlu0 %1418
        %s1424 = scalar_lea.vmem %s378, 80 [#allocation11]
        %1425 = vst.msk [vmem:[%s1424] sm:$0xf] %vm1144, %v1413
        %1426 = vst.msk [vmem:[%s1424 + $0x4] sm:$0xf] %vm1144, %v1415
        %1427 = vst.msk [vmem:[%s1424 + $0x8] sm:$0xf] %vm1144, %v1417
        %1428 = vst.msk [vmem:[%s1424 + $0xc] sm:$0xf] %vm1144, %v1419
        %1429 = vrot.lane.b32.xlu0 %v1382, 96
        %v1430 = vpop.permute.xlu0 %1429
        %1431 = vrot.lane.b32.xlu0 %v1383, 96
        %v1432 = vpop.permute.xlu0 %1431
        %1433 = vrot.lane.b32.xlu0 %v1384, 96
        %v1434 = vpop.permute.xlu0 %1433
        %1435 = vrot.lane.b32.xlu0 %v1385, 96
        %v1436 = vpop.permute.xlu0 %1435
        %s1441 = scalar_lea.vmem %s385, 80 [#allocation13]
        %1442 = vst.msk [vmem:[%s1441] sm:$0xf] %vm1144, %v1430
        %1443 = vst.msk [vmem:[%s1441 + $0x4] sm:$0xf] %vm1144, %v1432
        %1444 = vst.msk [vmem:[%s1441 + $0x8] sm:$0xf] %vm1144, %v1434
        %1445 = vst.msk [vmem:[%s1441 + $0xc] sm:$0xf] %vm1144, %v1436
        %s1446 = sand.u32 %s170, 1
        %s1447 = scalar_lea.sflag [#allocation4], %s1446
        %s1448 = sand.u32 %s170, 1
        %s1449 = smul.addr %s1448, 96
        %s1450 = scalar_lea.vmem [#allocation10], %s1449
        %s1451 = sand.u32 %s31, 1
        %s1452 = scalar_lea.sflag [#allocation12], %s1451
        %s1453 = sand.u32 %s196, 1
        %s1454 = smul.addr %s1453, 96
        %s1455 = scalar_lea.vmem [#allocation11], %s1454
        %s1456 = sand.u32 %s31, 1
        %s1457 = scalar_lea.sflag [#allocation12], %s1456
        %s1458 = sand.u32 %s222, 1
        %s1459 = smul.addr %s1458, 96
        %s1460 = scalar_lea.vmem [#allocation13], %s1459
        // Predicated region
        $region61: #{tpu_custom_call.1} parent=43 // pred_check
          %p1461 = pneg %p180
        $region62: #{tpu_custom_call.1} parent=43 // pred_check_branch
          %1463 = sbr.rel (%p1461) target = $region64
        $region63: #{tpu_custom_call.1} parent=43 // pred_region
          %s1465 = ssub.s32 1536, 1536
          %1466 = vsyncadd %s1447, %s1465
          %s1467 = smul.addr %s31, 24
          %s1468 = smul.addr %s1467, 64
          %s1469 = scalar_lea.hbm %s6, %s1468
          %s1470 = sshll.u32 %s1450, 4
          %s1471 = int_to_ptr.vmem [resolvable:$true] %s1470
          %1476 = dma.vmem_to_hbm [thread:$0]  %s1471, 1536, %s1469, %s1447, 64, 64, 4
        $region64: #{tpu_custom_call.1} parent=43 // pred_fallthru
          _
        // Predicated region
        $region65: #{tpu_custom_call.1} parent=43 // pred_check
          %p1477 = pneg %p206
        $region66: #{tpu_custom_call.1} parent=43 // pred_check_branch
          %1479 = sbr.rel (%p1477) target = $region68
        $region67: #{tpu_custom_call.1} parent=43 // pred_region
          %s1481 = ssub.s32 1536, 1536
          %1482 = vsyncadd %s1452, %s1481
          %s1483 = smul.addr %s31, 24
          %s1484 = smul.addr %s1483, 64
          %s1485 = scalar_lea.hbm %s7, %s1484
          %s1486 = sshll.u32 %s1455, 4
          %s1487 = int_to_ptr.vmem [resolvable:$true] %s1486
          %1492 = dma.vmem_to_hbm [thread:$0]  %s1487, 1536, %s1485, %s1452, 64, 64, 4
        $region68: #{tpu_custom_call.1} parent=43 // pred_fallthru
          _
        // Predicated region
        $region69: #{tpu_custom_call.1} parent=43 // pred_check
          %p1493 = pneg %p232
        $region70: #{tpu_custom_call.1} parent=43 // pred_check_branch
          %1495 = sbr.rel (%p1493) target = $region72
        $region71: #{tpu_custom_call.1} parent=43 // pred_region
          %s1497 = ssub.s32 1536, 1536
          %1498 = vsyncadd %s1457, %s1497
          %s1499 = smul.addr %s31, 24
          %s1500 = smul.addr %s1499, 64
          %s1501 = scalar_lea.hbm %s8, %s1500
          %s1502 = sshll.u32 %s1460, 4
          %s1503 = int_to_ptr.vmem [resolvable:$true] %s1502
          %1508 = dma.vmem_to_hbm [thread:$0]  %s1503, 1536, %s1501, %s1457, 64, 64, 4
        $region72: #{tpu_custom_call.1} parent=43 // pred_fallthru
          _
      $region44: #{tpu_custom_call.1} parent=5 // pred_fallthru
        _
      %p1509 = scmp.le.s32.totalorder 2, %s26
      // Predicated region
      $region73: #{tpu_custom_call.1} parent=5 // pred_check
        %p1510 = pneg %p1509
      $region74: #{tpu_custom_call.1} parent=5 // pred_check_branch
        %1512 = sbr.rel (%p1510) target = $region76
      $region75: #{tpu_custom_call.1} parent=5 // pred_region
        %s1513 = ssub.s32 %s26, 2
        // Predicated region
        $region77: #{tpu_custom_call.1} parent=75 // pred_check
          %p1514 = pneg %p186
        $region78: #{tpu_custom_call.1} parent=75 // pred_check_branch
          %1516 = sbr.rel (%p1514) target = $region80
        $region79: #{tpu_custom_call.1} parent=75 // pred_region
          %s1517 = sand.u32 %s171, 1
          %s1518 = scalar_lea.sflag [#allocation4], %s1517
          %s1519 = sand.u32 %s171, 1
          %s1520 = smul.addr %s1519, 96
          %s1521 = scalar_lea.vmem [#allocation10], %s1520
          %1522 = dma.done %s1518, 1536
        $region80: #{tpu_custom_call.1} parent=75 // pred_fallthru
          _
        // Predicated region
        $region81: #{tpu_custom_call.1} parent=75 // pred_check
          %p1523 = pneg %p212
        $region82: #{tpu_custom_call.1} parent=75 // pred_check_branch
          %1525 = sbr.rel (%p1523) target = $region84
        $region83: #{tpu_custom_call.1} parent=75 // pred_region
          %s1526 = sand.u32 %s32, 1
          %s1527 = scalar_lea.sflag [#allocation12], %s1526
          %s1528 = sand.u32 %s197, 1
          %s1529 = smul.addr %s1528, 96
          %s1530 = scalar_lea.vmem [#allocation11], %s1529
          %1531 = dma.done %s1527, 1536
        $region84: #{tpu_custom_call.1} parent=75 // pred_fallthru
          _
        // Predicated region
        $region85: #{tpu_custom_call.1} parent=75 // pred_check
          %p1532 = pneg %p238
        $region86: #{tpu_custom_call.1} parent=75 // pred_check_branch
          %1534 = sbr.rel (%p1532) target = $region88
        $region87: #{tpu_custom_call.1} parent=75 // pred_region
          %s1535 = sand.u32 %s32, 1
          %s1536 = scalar_lea.sflag [#allocation12], %s1535
          %s1537 = sand.u32 %s223, 1
          %s1538 = smul.addr %s1537, 96
          %s1539 = scalar_lea.vmem [#allocation13], %s1538
          %1540 = dma.done %s1536, 1536
        $region88: #{tpu_custom_call.1} parent=75 // pred_fallthru
          _
      $region76: #{tpu_custom_call.1} parent=5 // pred_fallthru
        _
    $region6: #{tpu_custom_call.1} parent=1 // loop_footer
      %s30 = sadd.s32 1, %s26
    $region7: #{tpu_custom_call.1} parent=1 // loop_footer_branch
      %25 = sbr.rel target = $region3
    $region8: #{tpu_custom_call.1} parent=1 // loop_exit
      _
    %1541 = vsyncpa [#allocation3], 1
    %s1542 = scalar_lea.sflag [#allocation3], 1
    %1543 = vsyncpa %s1542, 1
    %1544 = vsyncpa [#allocation6], 1
    %1545 = vsyncpa [#allocation9], 1
    %1546 = vsyncpa [#allocation4], 1
    %s1547 = scalar_lea.sflag [#allocation4], 1
    %1548 = vsyncpa %s1547, 1
    %1549 = vsyncpa [#allocation12], 1
    %s1550 = scalar_lea.sflag [#allocation12], 1
    %1551 = vsyncpa %s1550, 1

</llo_original>
